<compile_context>
chip_gen: v7x
topology: tpu7x:2x2x1
jax: 0.10.0
libtpu: 0.0.40
codegen_flags: <defaults>
</compile_context>

<pallas_src>
import functools

import jax
import jax.numpy as jnp
from jax.experimental import pallas as pl
from jax.experimental.pallas import tpu as pltpu

LANE = 128  # lane width of the packed output slabs


# -----------------------------------------------------------------------------
# Fused Pallas kernel: M1 -> classifier -> M2 encoder -> M2 decoder.
# -----------------------------------------------------------------------------

def _fused_kernel(x_ref, eps1_ref, eps2_ref,
                  m1_w1, m1_b1, m1_wh, m1_bh,
                  c_w1, c_b1, c_w2, c_b2, c_w3, c_b3,
                  e_w1, e_b1, e_w2, e_b2, e_wh, e_bh,
                  d_w1, d_b1, d_w2, d_b2, d_w3, d_b3,
                  big_ref, small_ref):
    f32 = jnp.float32
    Bp = x_ref.shape[0]            # padded batch (multiple of 8)
    Z1 = eps1_ref.shape[1]
    Z2 = eps2_ref.shape[1]
    NBp = eps2_ref.shape[0]        # NF * Bp
    NF = NBp // Bp

    def lin(a, w_ref, b_ref):
        return jnp.dot(a, w_ref[...], preferred_element_type=f32) + b_ref[...]

    # ---- M1 premodel: z1 = mu1 + exp(logsigma1) * eps1 -----------------------
    h = jnp.maximum(lin(x_ref[...], m1_w1, m1_b1), 0.0)
    heads1 = lin(h, m1_wh, m1_bh)                        # (Bp, 2*Z1) = mu || ls
    z1 = heads1[:, :Z1] + jnp.exp(heads1[:, Z1:2 * Z1]) * eps1_ref[...]

    # ---- classifier on z1: softmax / log_softmax -----------------------------
    ch1 = jnp.maximum(lin(z1, c_w1, c_b1), 0.0)
    ch2 = jnp.maximum(lin(ch1, c_w2, c_b2), 0.0)
    h3 = lin(ch2, c_w3, c_b3)                            # (Bp, NF)
    s = h3 - jnp.max(h3, axis=-1, keepdims=True)
    logq = s - jnp.log(jnp.sum(jnp.exp(s), axis=-1, keepdims=True))
    q = jnp.exp(logq)

    # ---- M2 encoder, unlabelled path ------------------------------------------
    # Input per class k is [z1, onehot(k)].  The one-hot matmul is replaced by a
    # broadcast-add of row (Z1+k) of e_w1, and the z1 matmul is computed ONCE.
    base = jnp.dot(z1, e_w1[:Z1, :], preferred_element_type=f32) + e_b1[...]
    e_w1y = e_w1[Z1:Z1 + NF, :]                          # (NF, enc_h1)
    eh1 = jnp.concatenate(
        [jnp.maximum(base + e_w1y[k:k + 1, :], 0.0) for k in range(NF)], axis=0)
    eh2 = jnp.maximum(lin(eh1, e_w2, e_b2), 0.0)         # (NBp, enc_h2)
    heads2 = lin(eh2, e_wh, e_bh)                        # (NBp, 128) lane-dense:
    mu2 = heads2[:, :Z2]                                 #   mu2 in cols [0, Z2)
    ls2 = heads2[:, Z2:2 * Z2]                           #   ls2 in cols [Z2, 2Z2)

    # ---- M2 decoder on [z2, y] -------------------------------------------------
    z2 = mu2 + jnp.exp(ls2) * eps2_ref[...]              # (NBp, Z2)
    dbase = jnp.dot(z2, d_w1[:Z2, :], preferred_element_type=f32) + d_b1[...]
    d_w1y = d_w1[Z2:Z2 + NF, :]                          # (NF, dec_h1)
    dh1 = jnp.concatenate(
        [jnp.maximum(dbase[k * Bp:(k + 1) * Bp, :] + d_w1y[k:k + 1, :], 0.0)
         for k in range(NF)], axis=0)
    dh2 = jnp.maximum(lin(dh1, d_w2, d_b2), 0.0)
    z1r_wide = lin(dh2, d_w3, d_b3)                      # (NBp, 128), real cols
                                                         #   [2*Z2, 2*Z2 + Z1)

    # ---- lane-dense outputs ------------------------------------------------------
    # Big slab = [mu2 | ls2 | z1_r | 0...]: the two wide matmul results occupy
    # disjoint (zero-padded) column ranges, so one VPU add + one un-masked full-
    # width store produces the packed slab.
    big_ref[...] = heads2 + z1r_wide

    # Small slab (classifier outputs + z1): zero-init then three tiny sub-stores.
    small_ref[...] = jnp.zeros_like(small_ref)
    small_ref[:, 0:NF] = q
    small_ref[:, NF:2 * NF] = logq
    small_ref[:, 2 * NF:2 * NF + Z1] = z1


# -----------------------------------------------------------------------------
# Parameters (deterministic, in-script).  PyTorch Linear weights (out, in) are
# stored pre-transposed as (in, out); mu/logsigma heads are fused; the encoder
# head and decoder output layers are zero-padded to 128 output lanes so they
# write directly into the packed output slab.
# -----------------------------------------------------------------------------

def _linear_params(key, fan_in, fan_out, bias_val=None):
    kw, kb = jax.random.split(key)
    scale = jnp.sqrt(2.0 / (fan_in + fan_out))          # xavier-normal-ish
    w = (jax.random.normal(kw, (fan_in, fan_out)) * scale).astype(jnp.float32)
    if bias_val is None:
        b = (jax.random.normal(kb, (1, fan_out)) * 0.01).astype(jnp.float32)
    else:
        b = jnp.full((1, fan_out), bias_val, dtype=jnp.float32)
    return w, b


def make_params(key, d_in, m1_h, z1_dim, z2_dim,
                enc_h1, enc_h2, dec_h1, dec_h2,
                nb_diseases, nb_features, clas_h1, clas_h2):
    assert 2 * z2_dim + z1_dim <= LANE
    assert nb_diseases == 1  # label block width == nb_features
    keys = jax.random.split(key, 13)
    p = {}
    # M1 premodel (simple VAE encoder producing z1); fused mu||logsigma head.
    p["m1_w1"], p["m1_b1"] = _linear_params(keys[0], d_in, m1_h)
    wmu, bmu = _linear_params(keys[1], m1_h, z1_dim)
    wls, bls = _linear_params(keys[2], m1_h, z1_dim, bias_val=-3.0)
    p["m1_wh"] = jnp.concatenate([wmu, wls], axis=1)
    p["m1_bh"] = jnp.concatenate([bmu, bls], axis=1)

    # M2 encoder: input = z1_dim + nb_diseases * nb_features
    enc_in = z1_dim + nb_diseases * nb_features
    p["e_w1"], p["e_b1"] = _linear_params(keys[3], enc_in, enc_h1, bias_val=0.1)
    p["e_w2"], p["e_b2"] = _linear_params(keys[4], enc_h1, enc_h2, bias_val=0.1)
    wmu, bmu = _linear_params(keys[5], enc_h2, z2_dim, bias_val=0.1)
    wls, bls = _linear_params(keys[6], enc_h2, z2_dim, bias_val=-5.0)
    e_wh = jnp.zeros((enc_h2, LANE), jnp.float32)
    e_wh = e_wh.at[:, 0:z2_dim].set(wmu).at[:, z2_dim:2 * z2_dim].set(wls)
    e_bh = jnp.zeros((1, LANE), jnp.float32)
    e_bh = e_bh.at[:, 0:z2_dim].set(bmu).at[:, z2_dim:2 * z2_dim].set(bls)
    p["e_wh"], p["e_bh"] = e_wh, e_bh

    # M2 decoder: input = z2_dim + nb_diseases * nb_features, output = z1_dim.
    dec_in = z2_dim + nb_diseases * nb_features
    p["d_w1"], p["d_b1"] = _linear_params(keys[7], dec_in, dec_h1)
    p["d_w2"], p["d_b2"] = _linear_params(keys[8], dec_h1, dec_h2)
    w3, b3 = _linear_params(keys[9], dec_h2, z1_dim)
    lo, hi = 2 * z2_dim, 2 * z2_dim + z1_dim
    p["d_w3"] = jnp.zeros((dec_h2, LANE), jnp.float32).at[:, lo:hi].set(w3)
    p["d_b3"] = jnp.zeros((1, LANE), jnp.float32).at[:, lo:hi].set(b3)

    # classifier on z1
    p["c_w1"], p["c_b1"] = _linear_params(keys[10], z1_dim, clas_h1)
    p["c_w2"], p["c_b2"] = _linear_params(keys[11], clas_h1, clas_h2)
    p["c_w3"], p["c_b3"] = _linear_params(keys[12], clas_h2, nb_features)
    return p


# -----------------------------------------------------------------------------
# Forward pass: all compute in the single fused Pallas kernel; wrapper does
# layout plumbing only (row padding, slab unpacking, label construction).
# -----------------------------------------------------------------------------

def _round_up(n, m):
    return ((n + m - 1) // m) * m


@functools.partial(jax.jit, static_argnames=("nb_features",))
def m1_m2_vae_forward(params, x, eps1, eps2, *, nb_features):
    p = params
    f32 = jnp.float32
    B = x.shape[0]
    NF = nb_features
    Z1 = eps1.shape[1]
    Z2 = eps2.shape[1]

    x = x.reshape(B, -1).astype(f32)
    eps1 = eps1.astype(f32)
    eps2 = eps2.astype(f32)

    # pad the row dimension to a multiple of 8 (sublane tile)
    Bp = _round_up(B, 8)
    NBp = NF * Bp
    if Bp != B:
        x = jnp.pad(x, ((0, Bp - B), (0, 0)))
        eps1 = jnp.pad(eps1, ((0, Bp - B), (0, 0)))
        eps2 = jnp.pad(eps2.reshape(NF, B, Z2),
                       ((0, 0), (0, Bp - B), (0, 0))).reshape(NBp, Z2)

    inputs = (x, eps1, eps2,
              p["m1_w1"], p["m1_b1"], p["m1_wh"], p["m1_bh"],
              p["c_w1"], p["c_b1"], p["c_w2"], p["c_b2"], p["c_w3"], p["c_b3"],
              p["e_w1"], p["e_b1"], p["e_w2"], p["e_b2"], p["e_wh"], p["e_bh"],
              p["d_w1"], p["d_b1"], p["d_w2"], p["d_b2"], p["d_w3"], p["d_b3"])

    def mm_flops(rows, w):
        return 2 * rows * w.shape[0] * w.shape[1]

    flops = (mm_flops(Bp, p["m1_w1"]) + mm_flops(Bp, p["m1_wh"])
             + mm_flops(Bp, p["c_w1"]) + mm_flops(Bp, p["c_w2"])
             + mm_flops(Bp, p["c_w3"])
             + 2 * Bp * Z1 * p["e_w1"].shape[1]
             + mm_flops(NBp, p["e_w2"]) + mm_flops(NBp, p["e_wh"])
             + 2 * NBp * Z2 * p["d_w1"].shape[1]
             + mm_flops(NBp, p["d_w2"]) + mm_flops(NBp, p["d_w3"]))
    bytes_accessed = 4 * (sum(a.size for a in inputs) + (NBp + Bp) * LANE)
    cost = pl.CostEstimate(flops=int(flops),
                           transcendentals=int(Bp * (Z1 + 2 * NF) + 2 * NBp * Z2),
                           bytes_accessed=int(bytes_accessed))

    vmem = pl.BlockSpec(memory_space=pltpu.MemorySpace.VMEM)
    big, small = pl.pallas_call(
        _fused_kernel,
        out_shape=(jax.ShapeDtypeStruct((NBp, LANE), f32),
                   jax.ShapeDtypeStruct((Bp, LANE), f32)),
        in_specs=[vmem] * len(inputs),
        out_specs=(vmem, vmem),
        cost_estimate=cost,
    )(*inputs)

    # un-pad rows and un-pack the lane-dense slabs (layout plumbing only)
    big = big.reshape(NF, Bp, LANE)[:, :B, :].reshape(NF * B, LANE)
    mu2 = big[:, 0:Z2]
    ls2 = big[:, Z2:2 * Z2]
    z1_r = big[:, 2 * Z2:2 * Z2 + Z1]

    small = small[:B]
    qy_z1 = small[:, 0:NF]
    logqy_z1 = small[:, NF:2 * NF]
    z1 = small[:, 2 * NF:2 * NF + Z1]

    # block one-hot labels (class-major blocks) and block-tiled z1, matching
    # create_labels(...) / z1_flat.repeat(nb_features, 1) in the reference.
    y = jnp.repeat(jnp.eye(NF, dtype=f32), B, axis=0)
    z1_repeated = jnp.tile(z1, (NF, 1))
    return mu2, ls2, z1_r, qy_z1, logqy_z1, y, z1_repeated


# -----------------------------------------------------------------------------
# Pure-JAX reference (same math, plain XLA) for a numerical cross-check.
# -----------------------------------------------------------------------------

def _reference_forward(params, x, eps1, eps2, nb_features):
    p = params
    hp = jax.lax.Precision.HIGHEST
    Z1, Z2 = eps1.shape[1], eps2.shape[1]
    B, NF = x.shape[0], nb_features

    def lin(a, w, b):
        return jnp.dot(a, w, precision=hp) + b

    h = jax.nn.relu(lin(x, p["m1_w1"], p["m1_b1"]))
    heads1 = lin(h, p["m1_wh"], p["m1_bh"])
    z1 = heads1[:, :Z1] + jnp.exp(heads1[:, Z1:2 * Z1]) * eps1

    h1 = jax.nn.relu(lin(z1, p["c_w1"], p["c_b1"]))
    h2 = jax.nn.relu(lin(h1, p["c_w2"], p["c_b2"]))
    h3 = lin(h2, p["c_w3"], p["c_b3"])
    logq = jax.nn.log_softmax(h3, axis=-1)
    q = jnp.exp(logq)

    y = jnp.repeat(jnp.eye(NF, dtype=x.dtype), B, axis=0)
    z1_rep = jnp.tile(z1, (NF, 1))
    enc_in = jnp.concatenate([z1_rep, y], axis=1)
    e1 = jax.nn.relu(lin(enc_in, p["e_w1"], p["e_b1"]))
    e2 = jax.nn.relu(lin(e1, p["e_w2"], p["e_b2"]))
    heads2 = lin(e2, p["e_wh"], p["e_bh"])
    mu2, ls2 = heads2[:, :Z2], heads2[:, Z2:2 * Z2]

    z2 = mu2 + jnp.exp(ls2) * eps2
    dec_in = jnp.concatenate([z2, y], axis=1)
    d1 = jax.nn.relu(lin(dec_in, p["d_w1"], p["d_b1"]))
    d2 = jax.nn.relu(lin(d1, p["d_w2"], p["d_b2"]))
    z1_r = lin(d2, p["d_w3"], p["d_b3"])[:, 2 * Z2:2 * Z2 + Z1]
    return mu2, ls2, z1_r, q, logq, y, z1_rep


# -----------------------------------------------------------------------------
# Main
# -----------------------------------------------------------------------------

if __name__ == "__main__":
    B = 4              # batch
    D_IN = 32          # flattened input dim to M1
    M1_H = 32
    Z1_DIM = 16        # latent_dim_z1
    Z2_DIM = 8         # latent_dim_z2
    ENC_H1, ENC_H2 = 32, 24
    DEC_H1, DEC_H2 = 24, 32
    NB_DISEASES = 1
    NB_FEATURES = 5    # number of classes
    CLAS_H1, CLAS_H2 = 20, 16

    key = jax.random.PRNGKey(0)
    kp, kx, ke1, ke2 = jax.random.split(key, 4)

    params = make_params(kp, D_IN, M1_H, Z1_DIM, Z2_DIM,
                         ENC_H1, ENC_H2, DEC_H1, DEC_H2,
                         NB_DISEASES, NB_FEATURES, CLAS_H1, CLAS_H2)

    x = jax.random.normal(kx, (B, D_IN), dtype=jnp.float32)
    eps1 = jax.random.normal(ke1, (B, Z1_DIM), dtype=jnp.float32)
    eps2 = jax.random.normal(ke2, (NB_FEATURES * B, Z2_DIM), dtype=jnp.float32)

    outs = m1_m2_vae_forward(params, x, eps1, eps2, nb_features=NB_FEATURES)
    outs = jax.block_until_ready(outs)

    mu2, ls2, z1_r, qy_z1, logqy_z1, y, z1_rep = outs
    NB = NB_FEATURES * B
    assert mu2.shape == (NB, Z2_DIM)
    assert ls2.shape == (NB, Z2_DIM)
    assert z1_r.shape == (NB, Z1_DIM)
    assert qy_z1.shape == (B, NB_FEATURES)
    assert logqy_z1.shape == (B, NB_FEATURES)
    assert y.shape == (NB, NB_FEATURES)
    assert z1_rep.shape == (NB, Z1_DIM)
    assert bool(jnp.allclose(jnp.sum(qy_z1, axis=-1), 1.0, atol=1e-4))

    # numerical cross-check against plain-JAX reference of the same forward
    refs = _reference_forward(params, x, eps1, eps2, NB_FEATURES)
    for got, want in zip(outs, refs):
        assert bool(jnp.allclose(got, want, atol=2e-3, rtol=2e-3))

    print("KERNEL_OK")
</pallas_src>

<mosaic_0001>
module attributes {stable_mosaic.version = 11 : i64} {
  func.func @_fused_kernel(%arg0: memref<8x32xf32, #tpu.memory_space<vmem>>, %arg1: memref<8x16xf32, #tpu.memory_space<vmem>>, %arg2: memref<40x8xf32, #tpu.memory_space<vmem>>, %arg3: memref<32x32xf32, #tpu.memory_space<vmem>>, %arg4: memref<1x32xf32, #tpu.memory_space<vmem>>, %arg5: memref<32x32xf32, #tpu.memory_space<vmem>>, %arg6: memref<1x32xf32, #tpu.memory_space<vmem>>, %arg7: memref<16x20xf32, #tpu.memory_space<vmem>>, %arg8: memref<1x20xf32, #tpu.memory_space<vmem>>, %arg9: memref<20x16xf32, #tpu.memory_space<vmem>>, %arg10: memref<1x16xf32, #tpu.memory_space<vmem>>, %arg11: memref<16x5xf32, #tpu.memory_space<vmem>>, %arg12: memref<1x5xf32, #tpu.memory_space<vmem>>, %arg13: memref<21x32xf32, #tpu.memory_space<vmem>>, %arg14: memref<1x32xf32, #tpu.memory_space<vmem>>, %arg15: memref<32x24xf32, #tpu.memory_space<vmem>>, %arg16: memref<1x24xf32, #tpu.memory_space<vmem>>, %arg17: memref<24x128xf32, #tpu.memory_space<vmem>>, %arg18: memref<1x128xf32, #tpu.memory_space<vmem>>, %arg19: memref<13x24xf32, #tpu.memory_space<vmem>>, %arg20: memref<1x24xf32, #tpu.memory_space<vmem>>, %arg21: memref<24x32xf32, #tpu.memory_space<vmem>>, %arg22: memref<1x32xf32, #tpu.memory_space<vmem>>, %arg23: memref<32x128xf32, #tpu.memory_space<vmem>>, %arg24: memref<1x128xf32, #tpu.memory_space<vmem>>, %arg25: memref<40x128xf32, #tpu.memory_space<vmem>>, %arg26: memref<8x128xf32, #tpu.memory_space<vmem>>) attributes {dimension_semantics = [], scalar_prefetch = 0 : i64, scratch_operands = 0 : i64, tpu.core_type = #tpu.core_type<tc>} {
    %c0 = arith.constant 0 : index
    %c0_0 = arith.constant 0 : index
    %0 = vector.load %arg0[%c0, %c0_0] : memref<8x32xf32, #tpu.memory_space<vmem>>, vector<8x32xf32>
    %c0_1 = arith.constant 0 : index
    %c0_2 = arith.constant 0 : index
    %1 = vector.load %arg3[%c0_1, %c0_2] : memref<32x32xf32, #tpu.memory_space<vmem>>, vector<32x32xf32>
    %cst = arith.constant dense<0.000000e+00> : vector<8x32xf32>
    %2 = tpu.matmul %0, %1, %cst {dimension_numbers = #tpu.dot_dimension_numbers<[1], [0], [0], [1], [0, 0, 1, 1], [], []>} : vector<8x32xf32>, vector<32x32xf32>, vector<8x32xf32> -> vector<8x32xf32>
    %c0_3 = arith.constant 0 : index
    %c0_4 = arith.constant 0 : index
    %3 = vector.load %arg4[%c0_3, %c0_4] : memref<1x32xf32, #tpu.memory_space<vmem>>, vector<1x32xf32>
    %4 = vector.broadcast %3 : vector<1x32xf32> to vector<8x32xf32>
    %5 = arith.addf %2, %4 : vector<8x32xf32>
    %cst_5 = arith.constant 0.000000e+00 : f32
    %6 = vector.broadcast %cst_5 : f32 to vector<8x32xf32>
    %7 = arith.maximumf %5, %6 : vector<8x32xf32>
    %c0_6 = arith.constant 0 : index
    %c0_7 = arith.constant 0 : index
    %8 = vector.load %arg5[%c0_6, %c0_7] : memref<32x32xf32, #tpu.memory_space<vmem>>, vector<32x32xf32>
    %cst_8 = arith.constant dense<0.000000e+00> : vector<8x32xf32>
    %9 = tpu.matmul %7, %8, %cst_8 {dimension_numbers = #tpu.dot_dimension_numbers<[1], [0], [0], [1], [0, 0, 1, 1], [], []>} : vector<8x32xf32>, vector<32x32xf32>, vector<8x32xf32> -> vector<8x32xf32>
    %c0_9 = arith.constant 0 : index
    %c0_10 = arith.constant 0 : index
    %10 = vector.load %arg6[%c0_9, %c0_10] : memref<1x32xf32, #tpu.memory_space<vmem>>, vector<1x32xf32>
    %11 = vector.broadcast %10 : vector<1x32xf32> to vector<8x32xf32>
    %12 = arith.addf %9, %11 : vector<8x32xf32>
    %13 = vector.extract_strided_slice %12 {offsets = [0, 0], sizes = [8, 16], strides = [1, 1]} : vector<8x32xf32> to vector<8x16xf32>
    %14 = vector.extract_strided_slice %12 {offsets = [0, 16], sizes = [8, 16], strides = [1, 1]} : vector<8x32xf32> to vector<8x16xf32>
    %15 = math.exp %14 : vector<8x16xf32>
    %c0_11 = arith.constant 0 : index
    %c0_12 = arith.constant 0 : index
    %16 = vector.load %arg1[%c0_11, %c0_12] : memref<8x16xf32, #tpu.memory_space<vmem>>, vector<8x16xf32>
    %17 = arith.mulf %15, %16 : vector<8x16xf32>
    %18 = arith.addf %13, %17 : vector<8x16xf32>
    %c0_13 = arith.constant 0 : index
    %c0_14 = arith.constant 0 : index
    %19 = vector.load %arg7[%c0_13, %c0_14] : memref<16x20xf32, #tpu.memory_space<vmem>>, vector<16x20xf32>
    %cst_15 = arith.constant dense<0.000000e+00> : vector<8x20xf32>
    %20 = tpu.matmul %18, %19, %cst_15 {dimension_numbers = #tpu.dot_dimension_numbers<[1], [0], [0], [1], [0, 0, 1, 1], [], []>} : vector<8x16xf32>, vector<16x20xf32>, vector<8x20xf32> -> vector<8x20xf32>
    %c0_16 = arith.constant 0 : index
    %c0_17 = arith.constant 0 : index
    %21 = vector.load %arg8[%c0_16, %c0_17] : memref<1x20xf32, #tpu.memory_space<vmem>>, vector<1x20xf32>
    %22 = vector.broadcast %21 : vector<1x20xf32> to vector<8x20xf32>
    %23 = arith.addf %20, %22 : vector<8x20xf32>
    %cst_18 = arith.constant 0.000000e+00 : f32
    %24 = vector.broadcast %cst_18 : f32 to vector<8x20xf32>
    %25 = arith.maximumf %23, %24 : vector<8x20xf32>
    %c0_19 = arith.constant 0 : index
    %c0_20 = arith.constant 0 : index
    %26 = vector.load %arg9[%c0_19, %c0_20] : memref<20x16xf32, #tpu.memory_space<vmem>>, vector<20x16xf32>
    %cst_21 = arith.constant dense<0.000000e+00> : vector<8x16xf32>
    %27 = tpu.matmul %25, %26, %cst_21 {dimension_numbers = #tpu.dot_dimension_numbers<[1], [0], [0], [1], [0, 0, 1, 1], [], []>} : vector<8x20xf32>, vector<20x16xf32>, vector<8x16xf32> -> vector<8x16xf32>
    %c0_22 = arith.constant 0 : index
    %c0_23 = arith.constant 0 : index
    %28 = vector.load %arg10[%c0_22, %c0_23] : memref<1x16xf32, #tpu.memory_space<vmem>>, vector<1x16xf32>
    %29 = vector.broadcast %28 : vector<1x16xf32> to vector<8x16xf32>
    %30 = arith.addf %27, %29 : vector<8x16xf32>
    %cst_24 = arith.constant 0.000000e+00 : f32
    %31 = vector.broadcast %cst_24 : f32 to vector<8x16xf32>
    %32 = arith.maximumf %30, %31 : vector<8x16xf32>
    %c0_25 = arith.constant 0 : index
    %c0_26 = arith.constant 0 : index
    %33 = vector.load %arg11[%c0_25, %c0_26] : memref<16x5xf32, #tpu.memory_space<vmem>>, vector<16x5xf32>
    %cst_27 = arith.constant dense<0.000000e+00> : vector<8x5xf32>
    %34 = tpu.matmul %32, %33, %cst_27 {dimension_numbers = #tpu.dot_dimension_numbers<[1], [0], [0], [1], [0, 0, 1, 1], [], []>} : vector<8x16xf32>, vector<16x5xf32>, vector<8x5xf32> -> vector<8x5xf32>
    %c0_28 = arith.constant 0 : index
    %c0_29 = arith.constant 0 : index
    %35 = vector.load %arg12[%c0_28, %c0_29] : memref<1x5xf32, #tpu.memory_space<vmem>>, vector<1x5xf32>
    %36 = vector.broadcast %35 : vector<1x5xf32> to vector<8x5xf32>
    %37 = arith.addf %34, %36 : vector<8x5xf32>
    %cst_30 = arith.constant dense<0xFF800000> : vector<8xf32>
    %38 = vector.multi_reduction <maximumf>, %37, %cst_30 [1] : vector<8x5xf32> to vector<8xf32>
    %39 = vector.shape_cast %38 : vector<8xf32> to vector<8x1xf32>
    %40 = vector.broadcast %39 : vector<8x1xf32> to vector<8x5xf32>
    %41 = arith.subf %37, %40 : vector<8x5xf32>
    %42 = math.exp %41 : vector<8x5xf32>
    %cst_31 = arith.constant dense<0.000000e+00> : vector<8xf32>
    %43 = vector.multi_reduction <add>, %42, %cst_31 [1] : vector<8x5xf32> to vector<8xf32>
    %44 = vector.shape_cast %43 : vector<8xf32> to vector<8x1xf32>
    %45 = math.log %44 : vector<8x1xf32>
    %46 = vector.broadcast %45 : vector<8x1xf32> to vector<8x5xf32>
    %47 = arith.subf %41, %46 : vector<8x5xf32>
    %48 = math.exp %47 : vector<8x5xf32>
    %c0_32 = arith.constant 0 : index
    %c0_33 = arith.constant 0 : index
    %49 = vector.load %arg13[%c0_32, %c0_33] : memref<21x32xf32, #tpu.memory_space<vmem>>, vector<16x32xf32>
    %cst_34 = arith.constant dense<0.000000e+00> : vector<8x32xf32>
    %50 = tpu.matmul %18, %49, %cst_34 {dimension_numbers = #tpu.dot_dimension_numbers<[1], [0], [0], [1], [0, 0, 1, 1], [], []>} : vector<8x16xf32>, vector<16x32xf32>, vector<8x32xf32> -> vector<8x32xf32>
    %c0_35 = arith.constant 0 : index
    %c0_36 = arith.constant 0 : index
    %51 = vector.load %arg14[%c0_35, %c0_36] : memref<1x32xf32, #tpu.memory_space<vmem>>, vector<1x32xf32>
    %52 = vector.broadcast %51 : vector<1x32xf32> to vector<8x32xf32>
    %53 = arith.addf %50, %52 : vector<8x32xf32>
    %c16 = arith.constant 16 : index
    %c0_37 = arith.constant 0 : index
    %54 = vector.load %arg13[%c16, %c0_37] : memref<21x32xf32, #tpu.memory_space<vmem>>, vector<5x32xf32>
    %55 = vector.extract_strided_slice %54 {offsets = [0, 0], sizes = [1, 32], strides = [1, 1]} : vector<5x32xf32> to vector<1x32xf32>
    %56 = vector.broadcast %55 : vector<1x32xf32> to vector<8x32xf32>
    %57 = arith.addf %53, %56 : vector<8x32xf32>
    %cst_38 = arith.constant 0.000000e+00 : f32
    %58 = vector.broadcast %cst_38 : f32 to vector<8x32xf32>
    %59 = arith.maximumf %57, %58 : vector<8x32xf32>
    %60 = vector.extract_strided_slice %54 {offsets = [1, 0], sizes = [1, 32], strides = [1, 1]} : vector<5x32xf32> to vector<1x32xf32>
    %61 = vector.broadcast %60 : vector<1x32xf32> to vector<8x32xf32>
    %62 = arith.addf %53, %61 : vector<8x32xf32>
    %cst_39 = arith.constant 0.000000e+00 : f32
    %63 = vector.broadcast %cst_39 : f32 to vector<8x32xf32>
    %64 = arith.maximumf %62, %63 : vector<8x32xf32>
    %65 = vector.extract_strided_slice %54 {offsets = [2, 0], sizes = [1, 32], strides = [1, 1]} : vector<5x32xf32> to vector<1x32xf32>
    %66 = vector.broadcast %65 : vector<1x32xf32> to vector<8x32xf32>
    %67 = arith.addf %53, %66 : vector<8x32xf32>
    %cst_40 = arith.constant 0.000000e+00 : f32
    %68 = vector.broadcast %cst_40 : f32 to vector<8x32xf32>
    %69 = arith.maximumf %67, %68 : vector<8x32xf32>
    %70 = vector.extract_strided_slice %54 {offsets = [3, 0], sizes = [1, 32], strides = [1, 1]} : vector<5x32xf32> to vector<1x32xf32>
    %71 = vector.broadcast %70 : vector<1x32xf32> to vector<8x32xf32>
    %72 = arith.addf %53, %71 : vector<8x32xf32>
    %cst_41 = arith.constant 0.000000e+00 : f32
    %73 = vector.broadcast %cst_41 : f32 to vector<8x32xf32>
    %74 = arith.maximumf %72, %73 : vector<8x32xf32>
    %75 = vector.extract_strided_slice %54 {offsets = [4, 0], sizes = [1, 32], strides = [1, 1]} : vector<5x32xf32> to vector<1x32xf32>
    %76 = vector.broadcast %75 : vector<1x32xf32> to vector<8x32xf32>
    %77 = arith.addf %53, %76 : vector<8x32xf32>
    %cst_42 = arith.constant 0.000000e+00 : f32
    %78 = vector.broadcast %cst_42 : f32 to vector<8x32xf32>
    %79 = arith.maximumf %77, %78 : vector<8x32xf32>
    %80 = tpu.concatenate %59, %64, %69, %74, %79 in 0 : vector<8x32xf32>, vector<8x32xf32>, vector<8x32xf32>, vector<8x32xf32>, vector<8x32xf32> -> vector<40x32xf32>
    %c0_43 = arith.constant 0 : index
    %c0_44 = arith.constant 0 : index
    %81 = vector.load %arg15[%c0_43, %c0_44] : memref<32x24xf32, #tpu.memory_space<vmem>>, vector<32x24xf32>
    %cst_45 = arith.constant dense<0.000000e+00> : vector<40x24xf32>
    %82 = tpu.matmul %80, %81, %cst_45 {dimension_numbers = #tpu.dot_dimension_numbers<[1], [0], [0], [1], [0, 0, 1, 1], [], []>} : vector<40x32xf32>, vector<32x24xf32>, vector<40x24xf32> -> vector<40x24xf32>
    %c0_46 = arith.constant 0 : index
    %c0_47 = arith.constant 0 : index
    %83 = vector.load %arg16[%c0_46, %c0_47] : memref<1x24xf32, #tpu.memory_space<vmem>>, vector<1x24xf32>
    %84 = vector.broadcast %83 : vector<1x24xf32> to vector<40x24xf32>
    %85 = arith.addf %82, %84 : vector<40x24xf32>
    %cst_48 = arith.constant 0.000000e+00 : f32
    %86 = vector.broadcast %cst_48 : f32 to vector<40x24xf32>
    %87 = arith.maximumf %85, %86 : vector<40x24xf32>
    %c0_49 = arith.constant 0 : index
    %c0_50 = arith.constant 0 : index
    %88 = vector.load %arg17[%c0_49, %c0_50] : memref<24x128xf32, #tpu.memory_space<vmem>>, vector<24x128xf32>
    %cst_51 = arith.constant dense<0.000000e+00> : vector<40x128xf32>
    %89 = tpu.matmul %87, %88, %cst_51 {dimension_numbers = #tpu.dot_dimension_numbers<[1], [0], [0], [1], [0, 0, 1, 1], [], []>} : vector<40x24xf32>, vector<24x128xf32>, vector<40x128xf32> -> vector<40x128xf32>
    %c0_52 = arith.constant 0 : index
    %c0_53 = arith.constant 0 : index
    %90 = vector.load %arg18[%c0_52, %c0_53] : memref<1x128xf32, #tpu.memory_space<vmem>>, vector<1x128xf32>
    %91 = vector.broadcast %90 : vector<1x128xf32> to vector<40x128xf32>
    %92 = arith.addf %89, %91 : vector<40x128xf32>
    %93 = vector.extract_strided_slice %92 {offsets = [0, 0], sizes = [40, 8], strides = [1, 1]} : vector<40x128xf32> to vector<40x8xf32>
    %94 = vector.extract_strided_slice %92 {offsets = [0, 8], sizes = [40, 8], strides = [1, 1]} : vector<40x128xf32> to vector<40x8xf32>
    %95 = math.exp %94 : vector<40x8xf32>
    %c0_54 = arith.constant 0 : index
    %c0_55 = arith.constant 0 : index
    %96 = vector.load %arg2[%c0_54, %c0_55] : memref<40x8xf32, #tpu.memory_space<vmem>>, vector<40x8xf32>
    %97 = arith.mulf %95, %96 : vector<40x8xf32>
    %98 = arith.addf %93, %97 : vector<40x8xf32>
    %c0_56 = arith.constant 0 : index
    %c0_57 = arith.constant 0 : index
    %99 = vector.load %arg19[%c0_56, %c0_57] : memref<13x24xf32, #tpu.memory_space<vmem>>, vector<8x24xf32>
    %cst_58 = arith.constant dense<0.000000e+00> : vector<40x24xf32>
    %100 = tpu.matmul %98, %99, %cst_58 {dimension_numbers = #tpu.dot_dimension_numbers<[1], [0], [0], [1], [0, 0, 1, 1], [], []>} : vector<40x8xf32>, vector<8x24xf32>, vector<40x24xf32> -> vector<40x24xf32>
    %c0_59 = arith.constant 0 : index
    %c0_60 = arith.constant 0 : index
    %101 = vector.load %arg20[%c0_59, %c0_60] : memref<1x24xf32, #tpu.memory_space<vmem>>, vector<1x24xf32>
    %102 = vector.broadcast %101 : vector<1x24xf32> to vector<40x24xf32>
    %103 = arith.addf %100, %102 : vector<40x24xf32>
    %c8 = arith.constant 8 : index
    %c0_61 = arith.constant 0 : index
    %104 = vector.load %arg19[%c8, %c0_61] : memref<13x24xf32, #tpu.memory_space<vmem>>, vector<5x24xf32>
    %105 = vector.extract_strided_slice %103 {offsets = [0, 0], sizes = [8, 24], strides = [1, 1]} : vector<40x24xf32> to vector<8x24xf32>
    %106 = vector.extract_strided_slice %104 {offsets = [0, 0], sizes = [1, 24], strides = [1, 1]} : vector<5x24xf32> to vector<1x24xf32>
    %107 = vector.broadcast %106 : vector<1x24xf32> to vector<8x24xf32>
    %108 = arith.addf %105, %107 : vector<8x24xf32>
    %cst_62 = arith.constant 0.000000e+00 : f32
    %109 = vector.broadcast %cst_62 : f32 to vector<8x24xf32>
    %110 = arith.maximumf %108, %109 : vector<8x24xf32>
    %111 = vector.extract_strided_slice %103 {offsets = [8, 0], sizes = [8, 24], strides = [1, 1]} : vector<40x24xf32> to vector<8x24xf32>
    %112 = vector.extract_strided_slice %104 {offsets = [1, 0], sizes = [1, 24], strides = [1, 1]} : vector<5x24xf32> to vector<1x24xf32>
    %113 = vector.broadcast %112 : vector<1x24xf32> to vector<8x24xf32>
    %114 = arith.addf %111, %113 : vector<8x24xf32>
    %cst_63 = arith.constant 0.000000e+00 : f32
    %115 = vector.broadcast %cst_63 : f32 to vector<8x24xf32>
    %116 = arith.maximumf %114, %115 : vector<8x24xf32>
    %117 = vector.extract_strided_slice %103 {offsets = [16, 0], sizes = [8, 24], strides = [1, 1]} : vector<40x24xf32> to vector<8x24xf32>
    %118 = vector.extract_strided_slice %104 {offsets = [2, 0], sizes = [1, 24], strides = [1, 1]} : vector<5x24xf32> to vector<1x24xf32>
    %119 = vector.broadcast %118 : vector<1x24xf32> to vector<8x24xf32>
    %120 = arith.addf %117, %119 : vector<8x24xf32>
    %cst_64 = arith.constant 0.000000e+00 : f32
    %121 = vector.broadcast %cst_64 : f32 to vector<8x24xf32>
    %122 = arith.maximumf %120, %121 : vector<8x24xf32>
    %123 = vector.extract_strided_slice %103 {offsets = [24, 0], sizes = [8, 24], strides = [1, 1]} : vector<40x24xf32> to vector<8x24xf32>
    %124 = vector.extract_strided_slice %104 {offsets = [3, 0], sizes = [1, 24], strides = [1, 1]} : vector<5x24xf32> to vector<1x24xf32>
    %125 = vector.broadcast %124 : vector<1x24xf32> to vector<8x24xf32>
    %126 = arith.addf %123, %125 : vector<8x24xf32>
    %cst_65 = arith.constant 0.000000e+00 : f32
    %127 = vector.broadcast %cst_65 : f32 to vector<8x24xf32>
    %128 = arith.maximumf %126, %127 : vector<8x24xf32>
    %129 = vector.extract_strided_slice %103 {offsets = [32, 0], sizes = [8, 24], strides = [1, 1]} : vector<40x24xf32> to vector<8x24xf32>
    %130 = vector.extract_strided_slice %104 {offsets = [4, 0], sizes = [1, 24], strides = [1, 1]} : vector<5x24xf32> to vector<1x24xf32>
    %131 = vector.broadcast %130 : vector<1x24xf32> to vector<8x24xf32>
    %132 = arith.addf %129, %131 : vector<8x24xf32>
    %cst_66 = arith.constant 0.000000e+00 : f32
    %133 = vector.broadcast %cst_66 : f32 to vector<8x24xf32>
    %134 = arith.maximumf %132, %133 : vector<8x24xf32>
    %135 = tpu.concatenate %110, %116, %122, %128, %134 in 0 : vector<8x24xf32>, vector<8x24xf32>, vector<8x24xf32>, vector<8x24xf32>, vector<8x24xf32> -> vector<40x24xf32>
    %c0_67 = arith.constant 0 : index
    %c0_68 = arith.constant 0 : index
    %136 = vector.load %arg21[%c0_67, %c0_68] : memref<24x32xf32, #tpu.memory_space<vmem>>, vector<24x32xf32>
    %cst_69 = arith.constant dense<0.000000e+00> : vector<40x32xf32>
    %137 = tpu.matmul %135, %136, %cst_69 {dimension_numbers = #tpu.dot_dimension_numbers<[1], [0], [0], [1], [0, 0, 1, 1], [], []>} : vector<40x24xf32>, vector<24x32xf32>, vector<40x32xf32> -> vector<40x32xf32>
    %c0_70 = arith.constant 0 : index
    %c0_71 = arith.constant 0 : index
    %138 = vector.load %arg22[%c0_70, %c0_71] : memref<1x32xf32, #tpu.memory_space<vmem>>, vector<1x32xf32>
    %139 = vector.broadcast %138 : vector<1x32xf32> to vector<40x32xf32>
    %140 = arith.addf %137, %139 : vector<40x32xf32>
    %cst_72 = arith.constant 0.000000e+00 : f32
    %141 = vector.broadcast %cst_72 : f32 to vector<40x32xf32>
    %142 = arith.maximumf %140, %141 : vector<40x32xf32>
    %c0_73 = arith.constant 0 : index
    %c0_74 = arith.constant 0 : index
    %143 = vector.load %arg23[%c0_73, %c0_74] : memref<32x128xf32, #tpu.memory_space<vmem>>, vector<32x128xf32>
    %cst_75 = arith.constant dense<0.000000e+00> : vector<40x128xf32>
    %144 = tpu.matmul %142, %143, %cst_75 {dimension_numbers = #tpu.dot_dimension_numbers<[1], [0], [0], [1], [0, 0, 1, 1], [], []>} : vector<40x32xf32>, vector<32x128xf32>, vector<40x128xf32> -> vector<40x128xf32>
    %c0_76 = arith.constant 0 : index
    %c0_77 = arith.constant 0 : index
    %145 = vector.load %arg24[%c0_76, %c0_77] : memref<1x128xf32, #tpu.memory_space<vmem>>, vector<1x128xf32>
    %146 = vector.broadcast %145 : vector<1x128xf32> to vector<40x128xf32>
    %147 = arith.addf %144, %146 : vector<40x128xf32>
    %148 = arith.addf %92, %147 : vector<40x128xf32>
    %c0_78 = arith.constant 0 : index
    %c0_79 = arith.constant 0 : index
    %149 = vector.load %arg25[%c0_78, %c0_79] : memref<40x128xf32, #tpu.memory_space<vmem>>, vector<40x128xf32>
    tpu.vector_store %arg25[%c0_78, %c0_79], %148 {strides = array<i32>} : memref<40x128xf32, #tpu.memory_space<vmem>>, vector<40x128xf32>,
    %cst_80 = arith.constant 0.000000e+00 : f32
    %150 = vector.broadcast %cst_80 : f32 to vector<8x128xf32>
    %c0_81 = arith.constant 0 : index
    %c0_82 = arith.constant 0 : index
    %151 = vector.load %arg26[%c0_81, %c0_82] : memref<8x128xf32, #tpu.memory_space<vmem>>, vector<8x128xf32>
    tpu.vector_store %arg26[%c0_81, %c0_82], %150 {strides = array<i32>} : memref<8x128xf32, #tpu.memory_space<vmem>>, vector<8x128xf32>,
    %c0_83 = arith.constant 0 : index
    %c0_84 = arith.constant 0 : index
    %152 = vector.load %arg26[%c0_83, %c0_84] : memref<8x128xf32, #tpu.memory_space<vmem>>, vector<8x5xf32>
    tpu.vector_store %arg26[%c0_83, %c0_84], %48 {strides = array<i32>} : memref<8x128xf32, #tpu.memory_space<vmem>>, vector<8x5xf32>,
    %c0_85 = arith.constant 0 : index
    %c5 = arith.constant 5 : index
    %153 = vector.load %arg26[%c0_85, %c5] : memref<8x128xf32, #tpu.memory_space<vmem>>, vector<8x5xf32>
    tpu.vector_store %arg26[%c0_85, %c5], %47 {strides = array<i32>} : memref<8x128xf32, #tpu.memory_space<vmem>>, vector<8x5xf32>,
    %c0_86 = arith.constant 0 : index
    %c10 = arith.constant 10 : index
    %154 = vector.load %arg26[%c0_86, %c10] : memref<8x128xf32, #tpu.memory_space<vmem>>, vector<8x16xf32>
    tpu.vector_store %arg26[%c0_86, %c10], %18 {strides = array<i32>} : memref<8x128xf32, #tpu.memory_space<vmem>>, vector<8x16xf32>,
    return
  }
}

</mosaic_0001>

<llo_original>
// kernel: tile.9
$region0: #{tile.9}
  %s0 = inlined_call_operand.vmem [shape: f32[5,4,16], index: 0, kind: input, shape index: {}]
  %s1 = inlined_call_operand.vmem [shape: f32[20,16], index: 1, kind: output, shape index: {}]
  $region1: #{tile.9} parent=0
    #allocation0 [shape = 'u8[20480]{0}', space=vmem, size = 0x5000, scoped, tag = 'scoped mem for input reshape']
    %s3 = sshllo.u32 0, 4
    %s4 = smul.addr 4, 4
    %s5 = scalar_lea.vmem %s0, %s4
    %v6 = vld [vmem:[%s5] sm:%s3]
    %s7 = scalar_lea.vmem [#allocation0], 32
    %8 = vst [vmem:[%s7] sm:%s3] %v6
    %s9 = smul.addr 4, 3
    %s10 = scalar_lea.vmem %s0, %s9
    %v11 = vld [vmem:[%s10] sm:%s3]
    %s12 = scalar_lea.vmem [#allocation0], 24
    %13 = vst [vmem:[%s12] sm:%s3] %v11
    %s14 = smul.addr 4, 2
    %s15 = scalar_lea.vmem %s0, %s14
    %v16 = vld [vmem:[%s15] sm:%s3]
    %s17 = scalar_lea.vmem [#allocation0], 16
    %18 = vst [vmem:[%s17] sm:%s3] %v16
    %s19 = scalar_lea.vmem %s0, 4
    %v20 = vld [vmem:[%s19] sm:%s3]
    %s21 = scalar_lea.vmem [#allocation0], 8
    %22 = vst [vmem:[%s21] sm:%s3] %v20
    %v23 = vld [vmem:[%s0] sm:%s3]
    %24 = vst [vmem:[#allocation0] sm:%s3] %v23
    %v25 = vld [vmem:[#allocation0] sm:$0xf]
    %vm26 = vcmask 130048
    %27 = vst.msk [vmem:[%s1] sm:$0xf] %vm26, %v25
    %s28 = scalar_lea.vmem [#allocation0], 8
    %v29 = vld [vmem:[%s28] sm:$0xf]
    %vm30 = vcmask 130048
    %s31 = scalar_lea.vmem %s1, 4
    %32 = vst.msk [vmem:[%s31] sm:$0xf] %vm30, %v29
    %s33 = scalar_lea.vmem [#allocation0], 16
    %v34 = vld [vmem:[%s33] sm:$0xf]
    %vm35 = vcmask 130048
    %s36 = scalar_lea.vmem %s1, 8
    %37 = vst.msk [vmem:[%s36] sm:$0xf] %vm35, %v34
    %s38 = scalar_lea.vmem [#allocation0], 24
    %v39 = vld [vmem:[%s38] sm:$0xf]
    %vm40 = vcmask 130048
    %s41 = scalar_lea.vmem %s1, 12
    %42 = vst.msk [vmem:[%s41] sm:$0xf] %vm40, %v39
    %s43 = scalar_lea.vmem [#allocation0], 32
    %v44 = vld [vmem:[%s43] sm:$0xf]
    %vm45 = vcmask 130048
    %s46 = scalar_lea.vmem %s1, 16
    %47 = vst.msk [vmem:[%s46] sm:$0xf] %vm45, %v44

// kernel: m1_m2_vae_forward.1
$region0: #{m1_m2_vae_forward.1}
  #allocation0 [shape = 'u32[]', space=smem, size = 0x4, offset = 0x4, fixed_abs, tag = 'smem constant byte address 0x4 - core index']
  #allocation1 [shape = 'u32[144,128]{1,0:T(1,128)}', space=vmem, size = 0x12000, scoped, tag = 'internal scratch']
  %s0 = inlined_call_operand.vmem [shape: f32[8,32], index: 0, kind: input, shape index: {}]
  %s1 = inlined_call_operand.vmem [shape: f32[8,16], index: 1, kind: input, shape index: {}]
  %s2 = inlined_call_operand.vmem [shape: f32[40,8], index: 2, kind: input, shape index: {}]
  %s3 = inlined_call_operand.vmem [shape: f32[32,32], index: 3, kind: input, shape index: {}]
  %s4 = inlined_call_operand.vmem [shape: f32[1,32], index: 4, kind: input, shape index: {}]
  %s5 = inlined_call_operand.vmem [shape: f32[32,32], index: 5, kind: input, shape index: {}]
  %s6 = inlined_call_operand.vmem [shape: f32[1,32], index: 6, kind: input, shape index: {}]
  %s7 = inlined_call_operand.vmem [shape: f32[16,20], index: 7, kind: input, shape index: {}]
  %s8 = inlined_call_operand.vmem [shape: f32[1,20], index: 8, kind: input, shape index: {}]
  %s9 = inlined_call_operand.vmem [shape: f32[20,16], index: 9, kind: input, shape index: {}]
  %s10 = inlined_call_operand.vmem [shape: f32[1,16], index: 10, kind: input, shape index: {}]
  %s11 = inlined_call_operand.vmem [shape: f32[16,5], index: 11, kind: input, shape index: {}]
  %s12 = inlined_call_operand.vmem [shape: f32[1,5], index: 12, kind: input, shape index: {}]
  %s13 = inlined_call_operand.vmem [shape: f32[21,32], index: 13, kind: input, shape index: {}]
  %s14 = inlined_call_operand.vmem [shape: f32[1,32], index: 14, kind: input, shape index: {}]
  %s15 = inlined_call_operand.vmem [shape: f32[32,24], index: 15, kind: input, shape index: {}]
  %s16 = inlined_call_operand.vmem [shape: f32[1,24], index: 16, kind: input, shape index: {}]
  %s17 = inlined_call_operand.vmem [shape: f32[24,128], index: 17, kind: input, shape index: {}]
  %s18 = inlined_call_operand.vmem [shape: f32[1,128], index: 18, kind: input, shape index: {}]
  %s19 = inlined_call_operand.vmem [shape: f32[13,24], index: 19, kind: input, shape index: {}]
  %s20 = inlined_call_operand.vmem [shape: f32[1,24], index: 20, kind: input, shape index: {}]
  %s21 = inlined_call_operand.vmem [shape: f32[24,32], index: 21, kind: input, shape index: {}]
  %s22 = inlined_call_operand.vmem [shape: f32[1,32], index: 22, kind: input, shape index: {}]
  %s23 = inlined_call_operand.vmem [shape: f32[32,128], index: 23, kind: input, shape index: {}]
  %s24 = inlined_call_operand.vmem [shape: f32[1,128], index: 24, kind: input, shape index: {}]
  %s25 = inlined_call_operand.vmem [shape: f32[40,128], index: 25, kind: output, shape index: {0}]
  %s26 = inlined_call_operand.vmem [shape: f32[8,128], index: 26, kind: output, shape index: {1}]
  %27 = xla_tuple %s25, %s26
  %s28 = sld [smem:[#allocation0]]
  $region118: #{m1_m2_vae_forward.1} parent=0
    _
  %s30 = ssub.s32 1, %s28
  %s31 = scalar_select 0, %s30, %s28
  // Predicated region
  $region2: #{m1_m2_vae_forward.1} parent=0 // pred_check
    _
  $region3: #{m1_m2_vae_forward.1} parent=0 // pred_check_branch
    %33 = sbr.rel (0) target = $region5
  $region4: #{m1_m2_vae_forward.1} parent=0 // pred_region
    _
  $region5: #{m1_m2_vae_forward.1} parent=0 // pred_fallthru
    _
  // Predicated region
  $region6: #{m1_m2_vae_forward.1} parent=0 // pred_check
    _
  $region7: #{m1_m2_vae_forward.1} parent=0 // pred_check_branch
    %35 = sbr.rel (0) target = $region9
  $region8: #{m1_m2_vae_forward.1} parent=0 // pred_region
    _
  $region9: #{m1_m2_vae_forward.1} parent=0 // pred_fallthru
    _
  // Predicated region
  $region10: #{m1_m2_vae_forward.1} parent=0 // pred_check
    _
  $region11: #{m1_m2_vae_forward.1} parent=0 // pred_check_branch
    %37 = sbr.rel (0) target = $region13
  $region12: #{m1_m2_vae_forward.1} parent=0 // pred_region
    _
  $region13: #{m1_m2_vae_forward.1} parent=0 // pred_fallthru
    _
  // Predicated region
  $region14: #{m1_m2_vae_forward.1} parent=0 // pred_check
    _
  $region15: #{m1_m2_vae_forward.1} parent=0 // pred_check_branch
    %39 = sbr.rel (0) target = $region17
  $region16: #{m1_m2_vae_forward.1} parent=0 // pred_region
    _
  $region17: #{m1_m2_vae_forward.1} parent=0 // pred_fallthru
    _
  // Predicated region
  $region18: #{m1_m2_vae_forward.1} parent=0 // pred_check
    _
  $region19: #{m1_m2_vae_forward.1} parent=0 // pred_check_branch
    %41 = sbr.rel (0) target = $region21
  $region20: #{m1_m2_vae_forward.1} parent=0 // pred_region
    _
  $region21: #{m1_m2_vae_forward.1} parent=0 // pred_fallthru
    _
  // Predicated region
  $region22: #{m1_m2_vae_forward.1} parent=0 // pred_check
    _
  $region23: #{m1_m2_vae_forward.1} parent=0 // pred_check_branch
    %43 = sbr.rel (0) target = $region25
  $region24: #{m1_m2_vae_forward.1} parent=0 // pred_region
    _
  $region25: #{m1_m2_vae_forward.1} parent=0 // pred_fallthru
    _
  // Predicated region
  $region26: #{m1_m2_vae_forward.1} parent=0 // pred_check
    _
  $region27: #{m1_m2_vae_forward.1} parent=0 // pred_check_branch
    %45 = sbr.rel (0) target = $region29
  $region28: #{m1_m2_vae_forward.1} parent=0 // pred_region
    _
  $region29: #{m1_m2_vae_forward.1} parent=0 // pred_fallthru
    _
  // Predicated region
  $region30: #{m1_m2_vae_forward.1} parent=0 // pred_check
    _
  $region31: #{m1_m2_vae_forward.1} parent=0 // pred_check_branch
    %47 = sbr.rel (0) target = $region33
  $region32: #{m1_m2_vae_forward.1} parent=0 // pred_region
    _
  $region33: #{m1_m2_vae_forward.1} parent=0 // pred_fallthru
    _
  // Predicated region
  $region34: #{m1_m2_vae_forward.1} parent=0 // pred_check
    _
  $region35: #{m1_m2_vae_forward.1} parent=0 // pred_check_branch
    %49 = sbr.rel (0) target = $region37
  $region36: #{m1_m2_vae_forward.1} parent=0 // pred_region
    _
  $region37: #{m1_m2_vae_forward.1} parent=0 // pred_fallthru
    _
  // Predicated region
  $region38: #{m1_m2_vae_forward.1} parent=0 // pred_check
    _
  $region39: #{m1_m2_vae_forward.1} parent=0 // pred_check_branch
    %51 = sbr.rel (0) target = $region41
  $region40: #{m1_m2_vae_forward.1} parent=0 // pred_region
    _
  $region41: #{m1_m2_vae_forward.1} parent=0 // pred_fallthru
    _
  // Predicated region
  $region42: #{m1_m2_vae_forward.1} parent=0 // pred_check
    _
  $region43: #{m1_m2_vae_forward.1} parent=0 // pred_check_branch
    %53 = sbr.rel (0) target = $region45
  $region44: #{m1_m2_vae_forward.1} parent=0 // pred_region
    _
  $region45: #{m1_m2_vae_forward.1} parent=0 // pred_fallthru
    _
  // Predicated region
  $region46: #{m1_m2_vae_forward.1} parent=0 // pred_check
    _
  $region47: #{m1_m2_vae_forward.1} parent=0 // pred_check_branch
    %55 = sbr.rel (0) target = $region49
  $region48: #{m1_m2_vae_forward.1} parent=0 // pred_region
    _
  $region49: #{m1_m2_vae_forward.1} parent=0 // pred_fallthru
    _
  // Predicated region
  $region50: #{m1_m2_vae_forward.1} parent=0 // pred_check
    _
  $region51: #{m1_m2_vae_forward.1} parent=0 // pred_check_branch
    %57 = sbr.rel (0) target = $region53
  $region52: #{m1_m2_vae_forward.1} parent=0 // pred_region
    _
  $region53: #{m1_m2_vae_forward.1} parent=0 // pred_fallthru
    _
  // Predicated region
  $region54: #{m1_m2_vae_forward.1} parent=0 // pred_check
    _
  $region55: #{m1_m2_vae_forward.1} parent=0 // pred_check_branch
    %59 = sbr.rel (0) target = $region57
  $region56: #{m1_m2_vae_forward.1} parent=0 // pred_region
    _
  $region57: #{m1_m2_vae_forward.1} parent=0 // pred_fallthru
    _
  // Predicated region
  $region58: #{m1_m2_vae_forward.1} parent=0 // pred_check
    _
  $region59: #{m1_m2_vae_forward.1} parent=0 // pred_check_branch
    %61 = sbr.rel (0) target = $region61
  $region60: #{m1_m2_vae_forward.1} parent=0 // pred_region
    _
  $region61: #{m1_m2_vae_forward.1} parent=0 // pred_fallthru
    _
  // Predicated region
  $region62: #{m1_m2_vae_forward.1} parent=0 // pred_check
    _
  $region63: #{m1_m2_vae_forward.1} parent=0 // pred_check_branch
    %63 = sbr.rel (0) target = $region65
  $region64: #{m1_m2_vae_forward.1} parent=0 // pred_region
    _
  $region65: #{m1_m2_vae_forward.1} parent=0 // pred_fallthru
    _
  // Predicated region
  $region66: #{m1_m2_vae_forward.1} parent=0 // pred_check
    _
  $region67: #{m1_m2_vae_forward.1} parent=0 // pred_check_branch
    %65 = sbr.rel (0) target = $region69
  $region68: #{m1_m2_vae_forward.1} parent=0 // pred_region
    _
  $region69: #{m1_m2_vae_forward.1} parent=0 // pred_fallthru
    _
  // Predicated region
  $region70: #{m1_m2_vae_forward.1} parent=0 // pred_check
    _
  $region71: #{m1_m2_vae_forward.1} parent=0 // pred_check_branch
    %67 = sbr.rel (0) target = $region73
  $region72: #{m1_m2_vae_forward.1} parent=0 // pred_region
    _
  $region73: #{m1_m2_vae_forward.1} parent=0 // pred_fallthru
    _
  // Predicated region
  $region74: #{m1_m2_vae_forward.1} parent=0 // pred_check
    _
  $region75: #{m1_m2_vae_forward.1} parent=0 // pred_check_branch
    %69 = sbr.rel (0) target = $region77
  $region76: #{m1_m2_vae_forward.1} parent=0 // pred_region
    _
  $region77: #{m1_m2_vae_forward.1} parent=0 // pred_fallthru
    _
  // Predicated region
  $region78: #{m1_m2_vae_forward.1} parent=0 // pred_check
    _
  $region79: #{m1_m2_vae_forward.1} parent=0 // pred_check_branch
    %71 = sbr.rel (0) target = $region81
  $region80: #{m1_m2_vae_forward.1} parent=0 // pred_region
    _
  $region81: #{m1_m2_vae_forward.1} parent=0 // pred_fallthru
    _
  // Predicated region
  $region82: #{m1_m2_vae_forward.1} parent=0 // pred_check
    _
  $region83: #{m1_m2_vae_forward.1} parent=0 // pred_check_branch
    %73 = sbr.rel (0) target = $region85
  $region84: #{m1_m2_vae_forward.1} parent=0 // pred_region
    _
  $region85: #{m1_m2_vae_forward.1} parent=0 // pred_fallthru
    _
  // Predicated region
  $region86: #{m1_m2_vae_forward.1} parent=0 // pred_check
    _
  $region87: #{m1_m2_vae_forward.1} parent=0 // pred_check_branch
    %75 = sbr.rel (0) target = $region89
  $region88: #{m1_m2_vae_forward.1} parent=0 // pred_region
    _
  $region89: #{m1_m2_vae_forward.1} parent=0 // pred_fallthru
    _
  // Predicated region
  $region90: #{m1_m2_vae_forward.1} parent=0 // pred_check
    _
  $region91: #{m1_m2_vae_forward.1} parent=0 // pred_check_branch
    %77 = sbr.rel (0) target = $region93
  $region92: #{m1_m2_vae_forward.1} parent=0 // pred_region
    _
  $region93: #{m1_m2_vae_forward.1} parent=0 // pred_fallthru
    _
  // Predicated region
  $region94: #{m1_m2_vae_forward.1} parent=0 // pred_check
    _
  $region95: #{m1_m2_vae_forward.1} parent=0 // pred_check_branch
    %79 = sbr.rel (0) target = $region97
  $region96: #{m1_m2_vae_forward.1} parent=0 // pred_region
    _
  $region97: #{m1_m2_vae_forward.1} parent=0 // pred_fallthru
    _
  // Predicated region
  $region98: #{m1_m2_vae_forward.1} parent=0 // pred_check
    _
  $region99: #{m1_m2_vae_forward.1} parent=0 // pred_check_branch
    %81 = sbr.rel (0) target = $region101
  $region100: #{m1_m2_vae_forward.1} parent=0 // pred_region
    _
  $region101: #{m1_m2_vae_forward.1} parent=0 // pred_fallthru
    _
  %v82 = vld [vmem:[%s0] sm:$0xff]
  %v83 = vld [vmem:[%s3] sm:$0xff]
  %v84 = vld [vmem:[%s3 + $0x8] sm:$0xff]
  %v85 = vld [vmem:[%s3 + $0x10] sm:$0xff]
  %v86 = vld [vmem:[%s3 + $0x18] sm:$0xff]
  %v87 = vld [vmem:[%s4] sm:$0x1]
  %v89 = vlaneseq
  %v90 = vshrl.u32 %v89, 7
  %v91 = vsub.s32 0, %v90
  %v92 = vrot.slane %v87, %v91
  %vm94 = vcmask 261120
  %v96 = vsel %vm94, %v82, 0
  %98 = vmatprep.subr.mxu0 0.0
  %99 = vmatpush1.msra.mxu0 %v83
  %100 = vmatprep.subr.mxu0 0.0
  %101 = vmatpush1.msra.mxu0 %v84
  %102 = vmatprep.subr.mxu0 0.0
  %103 = vmatpush1.msra.mxu0 %v85
  %104 = vmatprep.subr.mxu0 0.0
  %105 = vmatpush1.msra.mxu0 %v86
  %106 = vmatprep.subr.mxu0 0.0
  %107 = vmatpush1.msra.mxu0 0.0
  %108 = vmatprep.subr.mxu0 0.0
  %109 = vmatpush1.msra.mxu0 0.0
  %110 = vmatprep.subr.mxu0 0.0
  %111 = vmatpush1.msra.mxu0 0.0
  %112 = vmatprep.subr.mxu0 0.0
  %113 = vmatpush1.msra.mxu0 0.0
  %114 = vmatprep.subr.mxu0 0.0
  %115 = vmatpush1.msra.mxu0 0.0
  %116 = vmatprep.subr.mxu0 0.0
  %117 = vmatpush1.msra.mxu0 0.0
  %118 = vmatprep.subr.mxu0 0.0
  %119 = vmatpush1.msra.mxu0 0.0
  %120 = vmatprep.subr.mxu0 0.0
  %121 = vmatpush1.msra.mxu0 0.0
  %122 = vmatprep.subr.mxu0 0.0
  %123 = vmatpush1.msra.mxu0 0.0
  %124 = vmatprep.subr.mxu0 0.0
  %125 = vmatpush1.msra.mxu0 0.0
  %126 = vmatprep.subr.mxu0 0.0
  %127 = vmatpush1.msra.mxu0 0.0
  %128 = vmatprep.subr.mxu0 0.0
  %129 = vmatpush1.msra.mxu0 0.0
  %130 = vmatprep.subr.mxu0 0.0
  %131 = vmatpush1.msra.mxu0 0.0
  %132 = vmatprep.subr.mxu0 0.0
  %133 = vmatpush1.msra.mxu0 0.0
  %134 = vmatprep.subr.mxu0 0.0
  %135 = vmatpush1.msra.mxu0 0.0
  %136 = vmatprep.subr.mxu0 0.0
  %137 = vmatpush1.msra.mxu0 0.0
  %138 = vmatprep.subr.mxu0 0.0
  %139 = vmatpush1.msra.mxu0 0.0
  %140 = vmatprep.subr.mxu0 0.0
  %141 = vmatpush1.msra.mxu0 0.0
  %142 = vmatprep.subr.mxu0 0.0
  %143 = vmatpush1.msra.mxu0 0.0
  %144 = vmatprep.subr.mxu0 0.0
  %145 = vmatpush1.msra.mxu0 0.0
  %146 = vmatprep.subr.mxu0 0.0
  %147 = vmatpush1.msra.mxu0 0.0
  %148 = vmatprep.subr.mxu0 0.0
  %149 = vmatpush1.msra.mxu0 0.0
  %150 = vmatprep.subr.mxu0 0.0
  %151 = vmatpush1.msra.mxu0 0.0
  %152 = vmatprep.subr.mxu0 0.0
  %153 = vmatpush1.msra.mxu0 0.0
  %154 = vmatprep.subr.mxu0 0.0
  %155 = vmatpush1.msra.mxu0 0.0
  %156 = vmatprep.subr.mxu0 0.0
  %157 = vmatpush1.msra.mxu0 0.0
  %158 = vmatprep.subr.mxu0 0.0
  %159 = vmatpush1.msra.mxu0 0.0
  %160 = vmatprep.subr.mxu0 0.0
  %161 = vmatpush1.msra.mxu0 0.0
  %162 = vmatprep.mubr.f32.mxu0 0.0
  %163 = vmatmul.mubr.f32.gmra.mrb[0].mxu0 %v96
  %v164 = vpop.f32.mrb[0].mxu0
  %v165 = vadd.f32 %v92, %v164
  %v166 = vpop.f32.mrb[0].mxu0
  %167 = vdwg.mxu0
  %v168 = vmax.f32 %v165, 0.0
  %v169 = vld [vmem:[%s5] sm:$0xff]
  %v170 = vld [vmem:[%s5 + $0x8] sm:$0xff]
  %v171 = vld [vmem:[%s5 + $0x10] sm:$0xff]
  %v172 = vld [vmem:[%s5 + $0x18] sm:$0xff]
  %v173 = vld [vmem:[%s6] sm:$0x1]
  %v175 = vlaneseq
  %v176 = vshrl.u32 %v175, 7
  %v177 = vsub.s32 0, %v176
  %v178 = vrot.slane %v173, %v177
  %v181 = vsel %vm94, %v168, 0
  %183 = vmatprep.subr.mxu0 0.0
  %184 = vmatpush1.msra.mxu0 %v169
  %185 = vmatprep.subr.mxu0 0.0
  %186 = vmatpush1.msra.mxu0 %v170
  %187 = vmatprep.subr.mxu0 0.0
  %188 = vmatpush1.msra.mxu0 %v171
  %189 = vmatprep.subr.mxu0 0.0
  %190 = vmatpush1.msra.mxu0 %v172
  %191 = vmatprep.subr.mxu0 0.0
  %192 = vmatpush1.msra.mxu0 0.0
  %193 = vmatprep.subr.mxu0 0.0
  %194 = vmatpush1.msra.mxu0 0.0
  %195 = vmatprep.subr.mxu0 0.0
  %196 = vmatpush1.msra.mxu0 0.0
  %197 = vmatprep.subr.mxu0 0.0
  %198 = vmatpush1.msra.mxu0 0.0
  %199 = vmatprep.subr.mxu0 0.0
  %200 = vmatpush1.msra.mxu0 0.0
  %201 = vmatprep.subr.mxu0 0.0
  %202 = vmatpush1.msra.mxu0 0.0
  %203 = vmatprep.subr.mxu0 0.0
  %204 = vmatpush1.msra.mxu0 0.0
  %205 = vmatprep.subr.mxu0 0.0
  %206 = vmatpush1.msra.mxu0 0.0
  %207 = vmatprep.subr.mxu0 0.0
  %208 = vmatpush1.msra.mxu0 0.0
  %209 = vmatprep.subr.mxu0 0.0
  %210 = vmatpush1.msra.mxu0 0.0
  %211 = vmatprep.subr.mxu0 0.0
  %212 = vmatpush1.msra.mxu0 0.0
  %213 = vmatprep.subr.mxu0 0.0
  %214 = vmatpush1.msra.mxu0 0.0
  %215 = vmatprep.subr.mxu0 0.0
  %216 = vmatpush1.msra.mxu0 0.0
  %217 = vmatprep.subr.mxu0 0.0
  %218 = vmatpush1.msra.mxu0 0.0
  %219 = vmatprep.subr.mxu0 0.0
  %220 = vmatpush1.msra.mxu0 0.0
  %221 = vmatprep.subr.mxu0 0.0
  %222 = vmatpush1.msra.mxu0 0.0
  %223 = vmatprep.subr.mxu0 0.0
  %224 = vmatpush1.msra.mxu0 0.0
  %225 = vmatprep.subr.mxu0 0.0
  %226 = vmatpush1.msra.mxu0 0.0
  %227 = vmatprep.subr.mxu0 0.0
  %228 = vmatpush1.msra.mxu0 0.0
  %229 = vmatprep.subr.mxu0 0.0
  %230 = vmatpush1.msra.mxu0 0.0
  %231 = vmatprep.subr.mxu0 0.0
  %232 = vmatpush1.msra.mxu0 0.0
  %233 = vmatprep.subr.mxu0 0.0
  %234 = vmatpush1.msra.mxu0 0.0
  %235 = vmatprep.subr.mxu0 0.0
  %236 = vmatpush1.msra.mxu0 0.0
  %237 = vmatprep.subr.mxu0 0.0
  %238 = vmatpush1.msra.mxu0 0.0
  %239 = vmatprep.subr.mxu0 0.0
  %240 = vmatpush1.msra.mxu0 0.0
  %241 = vmatprep.subr.mxu0 0.0
  %242 = vmatpush1.msra.mxu0 0.0
  %243 = vmatprep.subr.mxu0 0.0
  %244 = vmatpush1.msra.mxu0 0.0
  %245 = vmatprep.subr.mxu0 0.0
  %246 = vmatpush1.msra.mxu0 0.0
  %247 = vmatprep.mubr.f32.mxu0 0.0
  %248 = vmatmul.mubr.f32.gmra.mrb[0].mxu0 %v181
  %v249 = vpop.f32.mrb[0].mxu0
  %v250 = vadd.f32 %v178, %v249
  %v251 = vpop.f32.mrb[0].mxu0
  %252 = vdwg.mxu0
  %v253 = vmul.f32 %v250, 1.442695
  %v254 = vpow.pop %v253
  %v255 = vld [vmem:[%s1] sm:$0xff]
  %257 = vrot.lane.b32.xlu0 %v255, 16
  %v258 = vpop.permute.xlu0 %257
  %v260 = vmul.f32 %v254, %v258
  %262 = vrot.lane.b32.xlu0 %v260, 112
  %v263 = vpop.permute.xlu0 %262
  %v265 = vadd.f32 %v250, %v263
  %v266 = vld [vmem:[%s7] sm:$0xff]
  %v267 = vld [vmem:[%s7 + $0x8] sm:$0xff]
  %v268 = vld [vmem:[%s8] sm:$0x1]
  %v270 = vlaneseq
  %v271 = vshrl.u32 %v270, 7
  %v272 = vsub.s32 0, %v271
  %v273 = vrot.slane %v268, %v272
  %vm275 = vcmask 130048
  %v277 = vsel %vm275, %v265, 0
  %279 = vmatprep.subr.mxu0 0.0
  %280 = vmatpush1.msra.mxu0 %v266
  %281 = vmatprep.subr.mxu0 0.0
  %282 = vmatpush1.msra.mxu0 %v267
  %283 = vmatprep.subr.mxu0 0.0
  %284 = vmatpush1.msra.mxu0 0.0
  %285 = vmatprep.subr.mxu0 0.0
  %286 = vmatpush1.msra.mxu0 0.0
  %287 = vmatprep.subr.mxu0 0.0
  %288 = vmatpush1.msra.mxu0 0.0
  %289 = vmatprep.subr.mxu0 0.0
  %290 = vmatpush1.msra.mxu0 0.0
  %291 = vmatprep.subr.mxu0 0.0
  %292 = vmatpush1.msra.mxu0 0.0
  %293 = vmatprep.subr.mxu0 0.0
  %294 = vmatpush1.msra.mxu0 0.0
  %295 = vmatprep.subr.mxu0 0.0
  %296 = vmatpush1.msra.mxu0 0.0
  %297 = vmatprep.subr.mxu0 0.0
  %298 = vmatpush1.msra.mxu0 0.0
  %299 = vmatprep.subr.mxu0 0.0
  %300 = vmatpush1.msra.mxu0 0.0
  %301 = vmatprep.subr.mxu0 0.0
  %302 = vmatpush1.msra.mxu0 0.0
  %303 = vmatprep.subr.mxu0 0.0
  %304 = vmatpush1.msra.mxu0 0.0
  %305 = vmatprep.subr.mxu0 0.0
  %306 = vmatpush1.msra.mxu0 0.0
  %307 = vmatprep.subr.mxu0 0.0
  %308 = vmatpush1.msra.mxu0 0.0
  %309 = vmatprep.subr.mxu0 0.0
  %310 = vmatpush1.msra.mxu0 0.0
  %311 = vmatprep.subr.mxu0 0.0
  %312 = vmatpush1.msra.mxu0 0.0
  %313 = vmatprep.subr.mxu0 0.0
  %314 = vmatpush1.msra.mxu0 0.0
  %315 = vmatprep.subr.mxu0 0.0
  %316 = vmatpush1.msra.mxu0 0.0
  %317 = vmatprep.subr.mxu0 0.0
  %318 = vmatpush1.msra.mxu0 0.0
  %319 = vmatprep.subr.mxu0 0.0
  %320 = vmatpush1.msra.mxu0 0.0
  %321 = vmatprep.subr.mxu0 0.0
  %322 = vmatpush1.msra.mxu0 0.0
  %323 = vmatprep.subr.mxu0 0.0
  %324 = vmatpush1.msra.mxu0 0.0
  %325 = vmatprep.subr.mxu0 0.0
  %326 = vmatpush1.msra.mxu0 0.0
  %327 = vmatprep.subr.mxu0 0.0
  %328 = vmatpush1.msra.mxu0 0.0
  %329 = vmatprep.subr.mxu0 0.0
  %330 = vmatpush1.msra.mxu0 0.0
  %331 = vmatprep.subr.mxu0 0.0
  %332 = vmatpush1.msra.mxu0 0.0
  %333 = vmatprep.subr.mxu0 0.0
  %334 = vmatpush1.msra.mxu0 0.0
  %335 = vmatprep.subr.mxu0 0.0
  %336 = vmatpush1.msra.mxu0 0.0
  %337 = vmatprep.subr.mxu0 0.0
  %338 = vmatpush1.msra.mxu0 0.0
  %339 = vmatprep.subr.mxu0 0.0
  %340 = vmatpush1.msra.mxu0 0.0
  %341 = vmatprep.subr.mxu0 0.0
  %342 = vmatpush1.msra.mxu0 0.0
  %343 = vmatprep.mubr.f32.mxu0 0.0
  %344 = vmatmul.mubr.f32.gmra.mrb[0].mxu0 %v277
  %v345 = vpop.f32.mrb[0].mxu0
  %v346 = vadd.f32 %v273, %v345
  %v347 = vpop.f32.mrb[0].mxu0
  %348 = vdwg.mxu0
  %v349 = vmax.f32 %v346, 0.0
  %v350 = vld [vmem:[%s9] sm:$0xff]
  %v351 = vld [vmem:[%s9 + $0x8] sm:$0xff]
  %v352 = vld [vmem:[%s9 + $0x10] sm:$0xf]
  %v353 = vld [vmem:[%s10] sm:$0x1]
  %v355 = vlaneseq
  %v356 = vshrl.u32 %v355, 7
  %v357 = vsub.s32 0, %v356
  %v358 = vrot.slane %v353, %v357
  %vm360 = vcmask 162816
  %v362 = vsel %vm360, %v349, 0
  %vm364 = vcmask 1043456
  %v366 = vsel %vm364, %v352, 0
  %368 = vmatprep.subr.mxu0 0.0
  %369 = vmatpush1.msra.mxu0 %v350
  %370 = vmatprep.subr.mxu0 0.0
  %371 = vmatpush1.msra.mxu0 %v351
  %372 = vmatprep.subr.mxu0 0.0
  %373 = vmatpush1.msra.mxu0 %v366
  %374 = vmatprep.subr.mxu0 0.0
  %375 = vmatpush1.msra.mxu0 0.0
  %376 = vmatprep.subr.mxu0 0.0
  %377 = vmatpush1.msra.mxu0 0.0
  %378 = vmatprep.subr.mxu0 0.0
  %379 = vmatpush1.msra.mxu0 0.0
  %380 = vmatprep.subr.mxu0 0.0
  %381 = vmatpush1.msra.mxu0 0.0
  %382 = vmatprep.subr.mxu0 0.0
  %383 = vmatpush1.msra.mxu0 0.0
  %384 = vmatprep.subr.mxu0 0.0
  %385 = vmatpush1.msra.mxu0 0.0
  %386 = vmatprep.subr.mxu0 0.0
  %387 = vmatpush1.msra.mxu0 0.0
  %388 = vmatprep.subr.mxu0 0.0
  %389 = vmatpush1.msra.mxu0 0.0
  %390 = vmatprep.subr.mxu0 0.0
  %391 = vmatpush1.msra.mxu0 0.0
  %392 = vmatprep.subr.mxu0 0.0
  %393 = vmatpush1.msra.mxu0 0.0
  %394 = vmatprep.subr.mxu0 0.0
  %395 = vmatpush1.msra.mxu0 0.0
  %396 = vmatprep.subr.mxu0 0.0
  %397 = vmatpush1.msra.mxu0 0.0
  %398 = vmatprep.subr.mxu0 0.0
  %399 = vmatpush1.msra.mxu0 0.0
  %400 = vmatprep.subr.mxu0 0.0
  %401 = vmatpush1.msra.mxu0 0.0
  %402 = vmatprep.subr.mxu0 0.0
  %403 = vmatpush1.msra.mxu0 0.0
  %404 = vmatprep.subr.mxu0 0.0
  %405 = vmatpush1.msra.mxu0 0.0
  %406 = vmatprep.subr.mxu0 0.0
  %407 = vmatpush1.msra.mxu0 0.0
  %408 = vmatprep.subr.mxu0 0.0
  %409 = vmatpush1.msra.mxu0 0.0
  %410 = vmatprep.subr.mxu0 0.0
  %411 = vmatpush1.msra.mxu0 0.0
  %412 = vmatprep.subr.mxu0 0.0
  %413 = vmatpush1.msra.mxu0 0.0
  %414 = vmatprep.subr.mxu0 0.0
  %415 = vmatpush1.msra.mxu0 0.0
  %416 = vmatprep.subr.mxu0 0.0
  %417 = vmatpush1.msra.mxu0 0.0
  %418 = vmatprep.subr.mxu0 0.0
  %419 = vmatpush1.msra.mxu0 0.0
  %420 = vmatprep.subr.mxu0 0.0
  %421 = vmatpush1.msra.mxu0 0.0
  %422 = vmatprep.subr.mxu0 0.0
  %423 = vmatpush1.msra.mxu0 0.0
  %424 = vmatprep.subr.mxu0 0.0
  %425 = vmatpush1.msra.mxu0 0.0
  %426 = vmatprep.subr.mxu0 0.0
  %427 = vmatpush1.msra.mxu0 0.0
  %428 = vmatprep.subr.mxu0 0.0
  %429 = vmatpush1.msra.mxu0 0.0
  %430 = vmatprep.subr.mxu0 0.0
  %431 = vmatpush1.msra.mxu0 0.0
  %432 = vmatprep.mubr.f32.mxu0 0.0
  %433 = vmatmul.mubr.f32.gmra.mrb[0].mxu0 %v362
  %v434 = vpop.f32.mrb[0].mxu0
  %v435 = vadd.f32 %v358, %v434
  %v436 = vpop.f32.mrb[0].mxu0
  %437 = vdwg.mxu0
  %v438 = vmax.f32 %v435, 0.0
  %v439 = vld [vmem:[%s11] sm:$0xff]
  %v440 = vld [vmem:[%s11 + $0x8] sm:$0xff]
  %v441 = vld [vmem:[%s12] sm:$0x1]
  %v443 = vlaneseq
  %v444 = vshrl.u32 %v443, 7
  %v445 = vsub.s32 0, %v444
  %v446 = vrot.slane %v441, %v445
  %v449 = vsel %vm275, %v438, 0
  %451 = vmatprep.subr.mxu0 0.0
  %452 = vmatpush1.msra.mxu0 %v439
  %453 = vmatprep.subr.mxu0 0.0
  %454 = vmatpush1.msra.mxu0 %v440
  %455 = vmatprep.subr.mxu0 0.0
  %456 = vmatpush1.msra.mxu0 0.0
  %457 = vmatprep.subr.mxu0 0.0
  %458 = vmatpush1.msra.mxu0 0.0
  %459 = vmatprep.subr.mxu0 0.0
  %460 = vmatpush1.msra.mxu0 0.0
  %461 = vmatprep.subr.mxu0 0.0
  %462 = vmatpush1.msra.mxu0 0.0
  %463 = vmatprep.subr.mxu0 0.0
  %464 = vmatpush1.msra.mxu0 0.0
  %465 = vmatprep.subr.mxu0 0.0
  %466 = vmatpush1.msra.mxu0 0.0
  %467 = vmatprep.subr.mxu0 0.0
  %468 = vmatpush1.msra.mxu0 0.0
  %469 = vmatprep.subr.mxu0 0.0
  %470 = vmatpush1.msra.mxu0 0.0
  %471 = vmatprep.subr.mxu0 0.0
  %472 = vmatpush1.msra.mxu0 0.0
  %473 = vmatprep.subr.mxu0 0.0
  %474 = vmatpush1.msra.mxu0 0.0
  %475 = vmatprep.subr.mxu0 0.0
  %476 = vmatpush1.msra.mxu0 0.0
  %477 = vmatprep.subr.mxu0 0.0
  %478 = vmatpush1.msra.mxu0 0.0
  %479 = vmatprep.subr.mxu0 0.0
  %480 = vmatpush1.msra.mxu0 0.0
  %481 = vmatprep.subr.mxu0 0.0
  %482 = vmatpush1.msra.mxu0 0.0
  %483 = vmatprep.subr.mxu0 0.0
  %484 = vmatpush1.msra.mxu0 0.0
  %485 = vmatprep.subr.mxu0 0.0
  %486 = vmatpush1.msra.mxu0 0.0
  %487 = vmatprep.subr.mxu0 0.0
  %488 = vmatpush1.msra.mxu0 0.0
  %489 = vmatprep.subr.mxu0 0.0
  %490 = vmatpush1.msra.mxu0 0.0
  %491 = vmatprep.subr.mxu0 0.0
  %492 = vmatpush1.msra.mxu0 0.0
  %493 = vmatprep.subr.mxu0 0.0
  %494 = vmatpush1.msra.mxu0 0.0
  %495 = vmatprep.subr.mxu0 0.0
  %496 = vmatpush1.msra.mxu0 0.0
  %497 = vmatprep.subr.mxu0 0.0
  %498 = vmatpush1.msra.mxu0 0.0
  %499 = vmatprep.subr.mxu0 0.0
  %500 = vmatpush1.msra.mxu0 0.0
  %501 = vmatprep.subr.mxu0 0.0
  %502 = vmatpush1.msra.mxu0 0.0
  %503 = vmatprep.subr.mxu0 0.0
  %504 = vmatpush1.msra.mxu0 0.0
  %505 = vmatprep.subr.mxu0 0.0
  %506 = vmatpush1.msra.mxu0 0.0
  %507 = vmatprep.subr.mxu0 0.0
  %508 = vmatpush1.msra.mxu0 0.0
  %509 = vmatprep.subr.mxu0 0.0
  %510 = vmatpush1.msra.mxu0 0.0
  %511 = vmatprep.subr.mxu0 0.0
  %512 = vmatpush1.msra.mxu0 0.0
  %513 = vmatprep.subr.mxu0 0.0
  %514 = vmatpush1.msra.mxu0 0.0
  %515 = vmatprep.mubr.f32.mxu0 0.0
  %516 = vmatmul.mubr.f32.gmra.mrb[0].mxu0 %v449
  %v517 = vpop.f32.mrb[0].mxu0
  %v518 = vadd.f32 %v446, %v517
  %v519 = vpop.f32.mrb[0].mxu0
  %520 = vdwg.mxu0
  %vm521 = vcmask 39936
  %v522 = vsel %vm521, %v518, -inf
  %523 = vmax.xlane.f32.xlu0 %v522
  %v524 = vpop.xlane.xlu0 %523
  %v525 = vsub.f32 %v518, %v524
  %v526 = vmul.f32 %v525, 1.442695
  %v527 = vpow.pop %v526
  %v528 = vsel %vm521, %v527, 0.0
  %529 = vadd.xlane.f32.xlu0 %v528
  %v530 = vpop.xlane.xlu0 %529
  %v531 = vlog2.pop %v530
  %v532 = vmul.f32 %v531, 0.6931472
  %v533 = vsub.f32 %v525, %v532
  %v534 = vmul.f32 %v533, 1.442695
  %v535 = vpow.pop %v534
  %v536 = vld [vmem:[%s13] sm:$0xff]
  %v537 = vld [vmem:[%s13 + $0x8] sm:$0xff]
  %v538 = vld [vmem:[%s14] sm:$0x1]
  %v540 = vlaneseq
  %v541 = vshrl.u32 %v540, 7
  %v542 = vsub.s32 0, %v541
  %v543 = vrot.slane %v538, %v542
  %545 = vmatprep.subr.mxu0 0.0
  %546 = vmatpush1.msra.mxu0 %v536
  %547 = vmatprep.subr.mxu0 0.0
  %548 = vmatpush1.msra.mxu0 %v537
  %549 = vmatprep.subr.mxu0 0.0
  %550 = vmatpush1.msra.mxu0 0.0
  %551 = vmatprep.subr.mxu0 0.0
  %552 = vmatpush1.msra.mxu0 0.0
  %553 = vmatprep.subr.mxu0 0.0
  %554 = vmatpush1.msra.mxu0 0.0
  %555 = vmatprep.subr.mxu0 0.0
  %556 = vmatpush1.msra.mxu0 0.0
  %557 = vmatprep.subr.mxu0 0.0
  %558 = vmatpush1.msra.mxu0 0.0
  %559 = vmatprep.subr.mxu0 0.0
  %560 = vmatpush1.msra.mxu0 0.0
  %561 = vmatprep.subr.mxu0 0.0
  %562 = vmatpush1.msra.mxu0 0.0
  %563 = vmatprep.subr.mxu0 0.0
  %564 = vmatpush1.msra.mxu0 0.0
  %565 = vmatprep.subr.mxu0 0.0
  %566 = vmatpush1.msra.mxu0 0.0
  %567 = vmatprep.subr.mxu0 0.0
  %568 = vmatpush1.msra.mxu0 0.0
  %569 = vmatprep.subr.mxu0 0.0
  %570 = vmatpush1.msra.mxu0 0.0
  %571 = vmatprep.subr.mxu0 0.0
  %572 = vmatpush1.msra.mxu0 0.0
  %573 = vmatprep.subr.mxu0 0.0
  %574 = vmatpush1.msra.mxu0 0.0
  %575 = vmatprep.subr.mxu0 0.0
  %576 = vmatpush1.msra.mxu0 0.0
  %577 = vmatprep.subr.mxu0 0.0
  %578 = vmatpush1.msra.mxu0 0.0
  %579 = vmatprep.subr.mxu0 0.0
  %580 = vmatpush1.msra.mxu0 0.0
  %581 = vmatprep.subr.mxu0 0.0
  %582 = vmatpush1.msra.mxu0 0.0
  %583 = vmatprep.subr.mxu0 0.0
  %584 = vmatpush1.msra.mxu0 0.0
  %585 = vmatprep.subr.mxu0 0.0
  %586 = vmatpush1.msra.mxu0 0.0
  %587 = vmatprep.subr.mxu0 0.0
  %588 = vmatpush1.msra.mxu0 0.0
  %589 = vmatprep.subr.mxu0 0.0
  %590 = vmatpush1.msra.mxu0 0.0
  %591 = vmatprep.subr.mxu0 0.0
  %592 = vmatpush1.msra.mxu0 0.0
  %593 = vmatprep.subr.mxu0 0.0
  %594 = vmatpush1.msra.mxu0 0.0
  %595 = vmatprep.subr.mxu0 0.0
  %596 = vmatpush1.msra.mxu0 0.0
  %597 = vmatprep.subr.mxu0 0.0
  %598 = vmatpush1.msra.mxu0 0.0
  %599 = vmatprep.subr.mxu0 0.0
  %600 = vmatpush1.msra.mxu0 0.0
  %601 = vmatprep.subr.mxu0 0.0
  %602 = vmatpush1.msra.mxu0 0.0
  %603 = vmatprep.subr.mxu0 0.0
  %604 = vmatpush1.msra.mxu0 0.0
  %605 = vmatprep.subr.mxu0 0.0
  %606 = vmatpush1.msra.mxu0 0.0
  %607 = vmatprep.subr.mxu0 0.0
  %608 = vmatpush1.msra.mxu0 0.0
  %609 = vmatprep.mubr.f32.mxu0 0.0
  %610 = vmatmul.mubr.f32.gmra.mrb[0].mxu0 %v277
  %v611 = vpop.f32.mrb[0].mxu0
  %v612 = vadd.f32 %v543, %v611
  %v613 = vpop.f32.mrb[0].mxu0
  %614 = vdwg.mxu0
  %v615 = vld [vmem:[%s13 + $0x10] sm:$0x1f]
  %v616 = vlaneseq
  %v617 = vshrl.u32 %v616, 7
  %v618 = vsub.s32 0, %v617
  %v619 = vrot.slane %v615, %v618
  %v620 = vadd.f32 %v612, %v619
  %v621 = vmax.f32 %v620, 0.0
  %v622 = vlaneseq
  %v623 = vshrl.u32 %v622, 7
  %v624 = vsub.s32 1, %v623
  %v625 = vrot.slane %v615, %v624
  %v626 = vadd.f32 %v612, %v625
  %v627 = vmax.f32 %v626, 0.0
  %v628 = vlaneseq
  %v629 = vshrl.u32 %v628, 7
  %v630 = vsub.s32 2, %v629
  %v631 = vrot.slane %v615, %v630
  %v632 = vadd.f32 %v612, %v631
  %v633 = vmax.f32 %v632, 0.0
  %v634 = vlaneseq
  %v635 = vshrl.u32 %v634, 7
  %v636 = vsub.s32 3, %v635
  %v637 = vrot.slane %v615, %v636
  %v638 = vadd.f32 %v612, %v637
  %v639 = vmax.f32 %v638, 0.0
  %v640 = vlaneseq
  %v641 = vshrl.u32 %v640, 7
  %v642 = vsub.s32 4, %v641
  %v643 = vrot.slane %v615, %v642
  %v644 = vadd.f32 %v612, %v643
  %v645 = vmax.f32 %v644, 0.0
  %v646 = vld [vmem:[%s15] sm:$0xff]
  %v647 = vld [vmem:[%s15 + $0x8] sm:$0xff]
  %v648 = vld [vmem:[%s15 + $0x10] sm:$0xff]
  %v649 = vld [vmem:[%s15 + $0x18] sm:$0xff]
  %v650 = vld [vmem:[%s16] sm:$0x1]
  %v652 = vlaneseq
  %v653 = vshrl.u32 %v652, 7
  %v654 = vsub.s32 0, %v653
  %v655 = vrot.slane %v650, %v654
  %v658 = vsel %vm94, %v621, 0
  %v661 = vsel %vm94, %v627, 0
  %v664 = vsel %vm94, %v633, 0
  %v667 = vsel %vm94, %v639, 0
  %v670 = vsel %vm94, %v645, 0
  %672 = vmatprep.subr.mxu0 0.0
  %673 = vmatpush1.msra.mxu0 %v646
  %674 = vmatprep.subr.mxu0 0.0
  %675 = vmatpush1.msra.mxu0 %v647
  %676 = vmatprep.subr.mxu0 0.0
  %677 = vmatpush1.msra.mxu0 %v648
  %678 = vmatprep.subr.mxu0 0.0
  %679 = vmatpush1.msra.mxu0 %v649
  %680 = vmatprep.subr.mxu0 0.0
  %681 = vmatpush1.msra.mxu0 0.0
  %682 = vmatprep.subr.mxu0 0.0
  %683 = vmatpush1.msra.mxu0 0.0
  %684 = vmatprep.subr.mxu0 0.0
  %685 = vmatpush1.msra.mxu0 0.0
  %686 = vmatprep.subr.mxu0 0.0
  %687 = vmatpush1.msra.mxu0 0.0
  %688 = vmatprep.subr.mxu0 0.0
  %689 = vmatpush1.msra.mxu0 0.0
  %690 = vmatprep.subr.mxu0 0.0
  %691 = vmatpush1.msra.mxu0 0.0
  %692 = vmatprep.subr.mxu0 0.0
  %693 = vmatpush1.msra.mxu0 0.0
  %694 = vmatprep.subr.mxu0 0.0
  %695 = vmatpush1.msra.mxu0 0.0
  %696 = vmatprep.subr.mxu0 0.0
  %697 = vmatpush1.msra.mxu0 0.0
  %698 = vmatprep.subr.mxu0 0.0
  %699 = vmatpush1.msra.mxu0 0.0
  %700 = vmatprep.subr.mxu0 0.0
  %701 = vmatpush1.msra.mxu0 0.0
  %702 = vmatprep.subr.mxu0 0.0
  %703 = vmatpush1.msra.mxu0 0.0
  %704 = vmatprep.subr.mxu0 0.0
  %705 = vmatpush1.msra.mxu0 0.0
  %706 = vmatprep.subr.mxu0 0.0
  %707 = vmatpush1.msra.mxu0 0.0
  %708 = vmatprep.subr.mxu0 0.0
  %709 = vmatpush1.msra.mxu0 0.0
  %710 = vmatprep.subr.mxu0 0.0
  %711 = vmatpush1.msra.mxu0 0.0
  %712 = vmatprep.subr.mxu0 0.0
  %713 = vmatpush1.msra.mxu0 0.0
  %714 = vmatprep.subr.mxu0 0.0
  %715 = vmatpush1.msra.mxu0 0.0
  %716 = vmatprep.subr.mxu0 0.0
  %717 = vmatpush1.msra.mxu0 0.0
  %718 = vmatprep.subr.mxu0 0.0
  %719 = vmatpush1.msra.mxu0 0.0
  %720 = vmatprep.subr.mxu0 0.0
  %721 = vmatpush1.msra.mxu0 0.0
  %722 = vmatprep.subr.mxu0 0.0
  %723 = vmatpush1.msra.mxu0 0.0
  %724 = vmatprep.subr.mxu0 0.0
  %725 = vmatpush1.msra.mxu0 0.0
  %726 = vmatprep.subr.mxu0 0.0
  %727 = vmatpush1.msra.mxu0 0.0
  %728 = vmatprep.subr.mxu0 0.0
  %729 = vmatpush1.msra.mxu0 0.0
  %730 = vmatprep.subr.mxu0 0.0
  %731 = vmatpush1.msra.mxu0 0.0
  %732 = vmatprep.subr.mxu0 0.0
  %733 = vmatpush1.msra.mxu0 0.0
  %734 = vmatprep.subr.mxu0 0.0
  %735 = vmatpush1.msra.mxu0 0.0
  %736 = vmatprep.mubr.f32.mxu0 0.0
  %737 = vmatmul.mubr.f32.gmra.mrb[0].mxu0 %v658
  %v738 = vpop.f32.mrb[0].mxu0
  %v739 = vadd.f32 %v655, %v738
  %v740 = vpop.f32.mrb[0].mxu0
  %741 = vmatprep.mubr.f32.mxu0 0.0
  %742 = vmatmul.mubr.f32.gmra.mrb[0].mxu0 %v661
  %v743 = vpop.f32.mrb[0].mxu0
  %v744 = vadd.f32 %v655, %v743
  %v745 = vpop.f32.mrb[0].mxu0
  %746 = vmatprep.mubr.f32.mxu0 0.0
  %747 = vmatmul.mubr.f32.gmra.mrb[0].mxu0 %v664
  %v748 = vpop.f32.mrb[0].mxu0
  %v749 = vadd.f32 %v655, %v748
  %v750 = vpop.f32.mrb[0].mxu0
  %751 = vmatprep.mubr.f32.mxu0 0.0
  %752 = vmatmul.mubr.f32.gmra.mrb[0].mxu0 %v667
  %v753 = vpop.f32.mrb[0].mxu0
  %v754 = vadd.f32 %v655, %v753
  %v755 = vpop.f32.mrb[0].mxu0
  %756 = vmatprep.mubr.f32.mxu0 0.0
  %757 = vmatmul.mubr.f32.gmra.mrb[0].mxu0 %v670
  %v758 = vpop.f32.mrb[0].mxu0
  %v759 = vadd.f32 %v655, %v758
  %v760 = vpop.f32.mrb[0].mxu0
  %761 = vdwg.mxu0
  %v762 = vmax.f32 %v739, 0.0
  %v763 = vmax.f32 %v744, 0.0
  %v764 = vmax.f32 %v749, 0.0
  %v765 = vmax.f32 %v754, 0.0
  %v766 = vmax.f32 %v759, 0.0
  %v767 = vld [vmem:[%s17] sm:$0xff]
  %v768 = vld [vmem:[%s17 + $0x8] sm:$0xff]
  %v769 = vld [vmem:[%s17 + $0x10] sm:$0xff]
  %v770 = vld [vmem:[%s18] sm:$0x1]
  %v772 = vlaneseq
  %v773 = vshrl.u32 %v772, 7
  %v774 = vsub.s32 0, %v773
  %v775 = vrot.slane %v770, %v774
  %vm777 = vcmask 195584
  %v779 = vsel %vm777, %v762, 0
  %v782 = vsel %vm777, %v763, 0
  %v785 = vsel %vm777, %v764, 0
  %v788 = vsel %vm777, %v765, 0
  %v791 = vsel %vm777, %v766, 0
  %793 = vmatprep.subr.mxu0 0.0
  %794 = vmatpush1.msra.mxu0 %v767
  %795 = vmatprep.subr.mxu0 0.0
  %796 = vmatpush1.msra.mxu0 %v768
  %797 = vmatprep.subr.mxu0 0.0
  %798 = vmatpush1.msra.mxu0 %v769
  %799 = vmatprep.subr.mxu0 0.0
  %800 = vmatpush1.msra.mxu0 0.0
  %801 = vmatprep.subr.mxu0 0.0
  %802 = vmatpush1.msra.mxu0 0.0
  %803 = vmatprep.subr.mxu0 0.0
  %804 = vmatpush1.msra.mxu0 0.0
  %805 = vmatprep.subr.mxu0 0.0
  %806 = vmatpush1.msra.mxu0 0.0
  %807 = vmatprep.subr.mxu0 0.0
  %808 = vmatpush1.msra.mxu0 0.0
  %809 = vmatprep.subr.mxu0 0.0
  %810 = vmatpush1.msra.mxu0 0.0
  %811 = vmatprep.subr.mxu0 0.0
  %812 = vmatpush1.msra.mxu0 0.0
  %813 = vmatprep.subr.mxu0 0.0
  %814 = vmatpush1.msra.mxu0 0.0
  %815 = vmatprep.subr.mxu0 0.0
  %816 = vmatpush1.msra.mxu0 0.0
  %817 = vmatprep.subr.mxu0 0.0
  %818 = vmatpush1.msra.mxu0 0.0
  %819 = vmatprep.subr.mxu0 0.0
  %820 = vmatpush1.msra.mxu0 0.0
  %821 = vmatprep.subr.mxu0 0.0
  %822 = vmatpush1.msra.mxu0 0.0
  %823 = vmatprep.subr.mxu0 0.0
  %824 = vmatpush1.msra.mxu0 0.0
  %825 = vmatprep.subr.mxu0 0.0
  %826 = vmatpush1.msra.mxu0 0.0
  %827 = vmatprep.subr.mxu0 0.0
  %828 = vmatpush1.msra.mxu0 0.0
  %829 = vmatprep.subr.mxu0 0.0
  %830 = vmatpush1.msra.mxu0 0.0
  %831 = vmatprep.subr.mxu0 0.0
  %832 = vmatpush1.msra.mxu0 0.0
  %833 = vmatprep.subr.mxu0 0.0
  %834 = vmatpush1.msra.mxu0 0.0
  %835 = vmatprep.subr.mxu0 0.0
  %836 = vmatpush1.msra.mxu0 0.0
  %837 = vmatprep.subr.mxu0 0.0
  %838 = vmatpush1.msra.mxu0 0.0
  %839 = vmatprep.subr.mxu0 0.0
  %840 = vmatpush1.msra.mxu0 0.0
  %841 = vmatprep.subr.mxu0 0.0
  %842 = vmatpush1.msra.mxu0 0.0
  %843 = vmatprep.subr.mxu0 0.0
  %844 = vmatpush1.msra.mxu0 0.0
  %845 = vmatprep.subr.mxu0 0.0
  %846 = vmatpush1.msra.mxu0 0.0
  %847 = vmatprep.subr.mxu0 0.0
  %848 = vmatpush1.msra.mxu0 0.0
  %849 = vmatprep.subr.mxu0 0.0
  %850 = vmatpush1.msra.mxu0 0.0
  %851 = vmatprep.subr.mxu0 0.0
  %852 = vmatpush1.msra.mxu0 0.0
  %853 = vmatprep.subr.mxu0 0.0
  %854 = vmatpush1.msra.mxu0 0.0
  %855 = vmatprep.subr.mxu0 0.0
  %856 = vmatpush1.msra.mxu0 0.0
  %857 = vmatprep.mubr.f32.mxu0 0.0
  %858 = vmatmul.mubr.f32.gmra.mrb[0].mxu0 %v779
  %v859 = vpop.f32.mrb[0].mxu0
  %v860 = vadd.f32 %v775, %v859
  %v861 = vpop.f32.mrb[0].mxu0
  %862 = vmatprep.mubr.f32.mxu0 0.0
  %863 = vmatmul.mubr.f32.gmra.mrb[0].mxu0 %v782
  %v864 = vpop.f32.mrb[0].mxu0
  %v865 = vadd.f32 %v775, %v864
  %v866 = vpop.f32.mrb[0].mxu0
  %867 = vmatprep.mubr.f32.mxu0 0.0
  %868 = vmatmul.mubr.f32.gmra.mrb[0].mxu0 %v785
  %v869 = vpop.f32.mrb[0].mxu0
  %v870 = vadd.f32 %v775, %v869
  %v871 = vpop.f32.mrb[0].mxu0
  %872 = vmatprep.mubr.f32.mxu0 0.0
  %873 = vmatmul.mubr.f32.gmra.mrb[0].mxu0 %v788
  %v874 = vpop.f32.mrb[0].mxu0
  %v875 = vadd.f32 %v775, %v874
  %v876 = vpop.f32.mrb[0].mxu0
  %877 = vmatprep.mubr.f32.mxu0 0.0
  %878 = vmatmul.mubr.f32.gmra.mrb[0].mxu0 %v791
  %v879 = vpop.f32.mrb[0].mxu0
  %v880 = vadd.f32 %v775, %v879
  %v881 = vpop.f32.mrb[0].mxu0
  %882 = vdwg.mxu0
  %v883 = vmul.f32 %v860, 1.442695
  %v884 = vpow.pop %v883
  %v885 = vmul.f32 %v865, 1.442695
  %v886 = vpow.pop %v885
  %v887 = vmul.f32 %v870, 1.442695
  %v888 = vpow.pop %v887
  %v889 = vmul.f32 %v875, 1.442695
  %v890 = vpow.pop %v889
  %v891 = vmul.f32 %v880, 1.442695
  %v892 = vpow.pop %v891
  %v893 = vld [vmem:[%s2] sm:$0xff]
  %v894 = vld [vmem:[%s2 + $0x8] sm:$0xff]
  %v895 = vld [vmem:[%s2 + $0x10] sm:$0xff]
  %v896 = vld [vmem:[%s2 + $0x18] sm:$0xff]
  %v897 = vld [vmem:[%s2 + $0x20] sm:$0xff]
  %903 = vrot.lane.b32.xlu0 %v893, 8
  %v904 = vpop.permute.xlu0 %903
  %905 = vrot.lane.b32.xlu0 %v894, 8
  %v906 = vpop.permute.xlu0 %905
  %907 = vrot.lane.b32.xlu0 %v895, 8
  %v908 = vpop.permute.xlu0 %907
  %909 = vrot.lane.b32.xlu0 %v896, 8
  %v910 = vpop.permute.xlu0 %909
  %911 = vrot.lane.b32.xlu0 %v897, 8
  %v912 = vpop.permute.xlu0 %911
  %v918 = vmul.f32 %v884, %v904
  %v919 = vmul.f32 %v886, %v906
  %v920 = vmul.f32 %v888, %v908
  %v921 = vmul.f32 %v890, %v910
  %v922 = vmul.f32 %v892, %v912
  %928 = vrot.lane.b32.xlu0 %v918, 120
  %v929 = vpop.permute.xlu0 %928
  %930 = vrot.lane.b32.xlu0 %v919, 120
  %v931 = vpop.permute.xlu0 %930
  %932 = vrot.lane.b32.xlu0 %v920, 120
  %v933 = vpop.permute.xlu0 %932
  %934 = vrot.lane.b32.xlu0 %v921, 120
  %v935 = vpop.permute.xlu0 %934
  %936 = vrot.lane.b32.xlu0 %v922, 120
  %v937 = vpop.permute.xlu0 %936
  %v943 = vadd.f32 %v860, %v929
  %v944 = vadd.f32 %v865, %v931
  %v945 = vadd.f32 %v870, %v933
  %v946 = vadd.f32 %v875, %v935
  %v947 = vadd.f32 %v880, %v937
  %v948 = vld [vmem:[%s19] sm:$0xff]
  %v949 = vld [vmem:[%s20] sm:$0x1]
  %v951 = vlaneseq
  %v952 = vshrl.u32 %v951, 7
  %v953 = vsub.s32 0, %v952
  %v954 = vrot.slane %v949, %v953
  %vm956 = vcmask 64512
  %v958 = vsel %vm956, %v943, 0
  %v961 = vsel %vm956, %v944, 0
  %v964 = vsel %vm956, %v945, 0
  %v967 = vsel %vm956, %v946, 0
  %v970 = vsel %vm956, %v947, 0
  %972 = vmatprep.subr.mxu0 0.0
  %973 = vmatpush1.msra.mxu0 %v948
  %974 = vmatprep.subr.mxu0 0.0
  %975 = vmatpush1.msra.mxu0 0.0
  %976 = vmatprep.subr.mxu0 0.0
  %977 = vmatpush1.msra.mxu0 0.0
  %978 = vmatprep.subr.mxu0 0.0
  %979 = vmatpush1.msra.mxu0 0.0
  %980 = vmatprep.subr.mxu0 0.0
  %981 = vmatpush1.msra.mxu0 0.0
  %982 = vmatprep.subr.mxu0 0.0
  %983 = vmatpush1.msra.mxu0 0.0
  %984 = vmatprep.subr.mxu0 0.0
  %985 = vmatpush1.msra.mxu0 0.0
  %986 = vmatprep.subr.mxu0 0.0
  %987 = vmatpush1.msra.mxu0 0.0
  %988 = vmatprep.subr.mxu0 0.0
  %989 = vmatpush1.msra.mxu0 0.0
  %990 = vmatprep.subr.mxu0 0.0
  %991 = vmatpush1.msra.mxu0 0.0
  %992 = vmatprep.subr.mxu0 0.0
  %993 = vmatpush1.msra.mxu0 0.0
  %994 = vmatprep.subr.mxu0 0.0
  %995 = vmatpush1.msra.mxu0 0.0
  %996 = vmatprep.subr.mxu0 0.0
  %997 = vmatpush1.msra.mxu0 0.0
  %998 = vmatprep.subr.mxu0 0.0
  %999 = vmatpush1.msra.mxu0 0.0
  %1000 = vmatprep.subr.mxu0 0.0
  %1001 = vmatpush1.msra.mxu0 0.0
  %1002 = vmatprep.subr.mxu0 0.0
  %1003 = vmatpush1.msra.mxu0 0.0
  %1004 = vmatprep.subr.mxu0 0.0
  %1005 = vmatpush1.msra.mxu0 0.0
  %1006 = vmatprep.subr.mxu0 0.0
  %1007 = vmatpush1.msra.mxu0 0.0
  %1008 = vmatprep.subr.mxu0 0.0
  %1009 = vmatpush1.msra.mxu0 0.0
  %1010 = vmatprep.subr.mxu0 0.0
  %1011 = vmatpush1.msra.mxu0 0.0
  %1012 = vmatprep.subr.mxu0 0.0
  %1013 = vmatpush1.msra.mxu0 0.0
  %1014 = vmatprep.subr.mxu0 0.0
  %1015 = vmatpush1.msra.mxu0 0.0
  %1016 = vmatprep.subr.mxu0 0.0
  %1017 = vmatpush1.msra.mxu0 0.0
  %1018 = vmatprep.subr.mxu0 0.0
  %1019 = vmatpush1.msra.mxu0 0.0
  %1020 = vmatprep.subr.mxu0 0.0
  %1021 = vmatpush1.msra.mxu0 0.0
  %1022 = vmatprep.subr.mxu0 0.0
  %1023 = vmatpush1.msra.mxu0 0.0
  %1024 = vmatprep.subr.mxu0 0.0
  %1025 = vmatpush1.msra.mxu0 0.0
  %1026 = vmatprep.subr.mxu0 0.0
  %1027 = vmatpush1.msra.mxu0 0.0
  %1028 = vmatprep.subr.mxu0 0.0
  %1029 = vmatpush1.msra.mxu0 0.0
  %1030 = vmatprep.subr.mxu0 0.0
  %1031 = vmatpush1.msra.mxu0 0.0
  %1032 = vmatprep.subr.mxu0 0.0
  %1033 = vmatpush1.msra.mxu0 0.0
  %1034 = vmatprep.subr.mxu0 0.0
  %1035 = vmatpush1.msra.mxu0 0.0
  %1036 = vmatprep.mubr.f32.mxu0 0.0
  %1037 = vmatmul.mubr.f32.gmra.mrb[0].mxu0 %v958
  %v1038 = vpop.f32.mrb[0].mxu0
  %v1039 = vadd.f32 %v954, %v1038
  %v1040 = vpop.f32.mrb[0].mxu0
  %1041 = vmatprep.mubr.f32.mxu0 0.0
  %1042 = vmatmul.mubr.f32.gmra.mrb[0].mxu0 %v961
  %v1043 = vpop.f32.mrb[0].mxu0
  %v1044 = vadd.f32 %v954, %v1043
  %v1045 = vpop.f32.mrb[0].mxu0
  %1046 = vmatprep.mubr.f32.mxu0 0.0
  %1047 = vmatmul.mubr.f32.gmra.mrb[0].mxu0 %v964
  %v1048 = vpop.f32.mrb[0].mxu0
  %v1049 = vadd.f32 %v954, %v1048
  %v1050 = vpop.f32.mrb[0].mxu0
  %1051 = vmatprep.mubr.f32.mxu0 0.0
  %1052 = vmatmul.mubr.f32.gmra.mrb[0].mxu0 %v967
  %v1053 = vpop.f32.mrb[0].mxu0
  %v1054 = vadd.f32 %v954, %v1053
  %v1055 = vpop.f32.mrb[0].mxu0
  %1056 = vmatprep.mubr.f32.mxu0 0.0
  %1057 = vmatmul.mubr.f32.gmra.mrb[0].mxu0 %v970
  %v1058 = vpop.f32.mrb[0].mxu0
  %v1059 = vadd.f32 %v954, %v1058
  %v1060 = vpop.f32.mrb[0].mxu0
  %1061 = vdwg.mxu0
  %v1062 = vld [vmem:[%s19 + $0x8] sm:$0x1f]
  %v1063 = vlaneseq
  %v1064 = vshrl.u32 %v1063, 7
  %v1065 = vsub.s32 0, %v1064
  %v1066 = vrot.slane %v1062, %v1065
  %v1067 = vadd.f32 %v1039, %v1066
  %v1068 = vmax.f32 %v1067, 0.0
  %v1069 = vlaneseq
  %v1070 = vshrl.u32 %v1069, 7
  %v1071 = vsub.s32 1, %v1070
  %v1072 = vrot.slane %v1062, %v1071
  %v1073 = vadd.f32 %v1044, %v1072
  %v1074 = vmax.f32 %v1073, 0.0
  %v1075 = vlaneseq
  %v1076 = vshrl.u32 %v1075, 7
  %v1077 = vsub.s32 2, %v1076
  %v1078 = vrot.slane %v1062, %v1077
  %v1079 = vadd.f32 %v1049, %v1078
  %v1080 = vmax.f32 %v1079, 0.0
  %v1081 = vlaneseq
  %v1082 = vshrl.u32 %v1081, 7
  %v1083 = vsub.s32 3, %v1082
  %v1084 = vrot.slane %v1062, %v1083
  %v1085 = vadd.f32 %v1054, %v1084
  %v1086 = vmax.f32 %v1085, 0.0
  %v1087 = vlaneseq
  %v1088 = vshrl.u32 %v1087, 7
  %v1089 = vsub.s32 4, %v1088
  %v1090 = vrot.slane %v1062, %v1089
  %v1091 = vadd.f32 %v1059, %v1090
  %v1092 = vmax.f32 %v1091, 0.0
  %v1093 = vld [vmem:[%s21] sm:$0xff]
  %v1094 = vld [vmem:[%s21 + $0x8] sm:$0xff]
  %v1095 = vld [vmem:[%s21 + $0x10] sm:$0xff]
  %v1096 = vld [vmem:[%s22] sm:$0x1]
  %v1098 = vlaneseq
  %v1099 = vshrl.u32 %v1098, 7
  %v1100 = vsub.s32 0, %v1099
  %v1101 = vrot.slane %v1096, %v1100
  %v1104 = vsel %vm777, %v1068, 0
  %v1107 = vsel %vm777, %v1074, 0
  %v1110 = vsel %vm777, %v1080, 0
  %v1113 = vsel %vm777, %v1086, 0
  %v1116 = vsel %vm777, %v1092, 0
  %1118 = vmatprep.subr.mxu0 0.0
  %1119 = vmatpush1.msra.mxu0 %v1093
  %1120 = vmatprep.subr.mxu0 0.0
  %1121 = vmatpush1.msra.mxu0 %v1094
  %1122 = vmatprep.subr.mxu0 0.0
  %1123 = vmatpush1.msra.mxu0 %v1095
  %1124 = vmatprep.subr.mxu0 0.0
  %1125 = vmatpush1.msra.mxu0 0.0
  %1126 = vmatprep.subr.mxu0 0.0
  %1127 = vmatpush1.msra.mxu0 0.0
  %1128 = vmatprep.subr.mxu0 0.0
  %1129 = vmatpush1.msra.mxu0 0.0
  %1130 = vmatprep.subr.mxu0 0.0
  %1131 = vmatpush1.msra.mxu0 0.0
  %1132 = vmatprep.subr.mxu0 0.0
  %1133 = vmatpush1.msra.mxu0 0.0
  %1134 = vmatprep.subr.mxu0 0.0
  %1135 = vmatpush1.msra.mxu0 0.0
  %1136 = vmatprep.subr.mxu0 0.0
  %1137 = vmatpush1.msra.mxu0 0.0
  %1138 = vmatprep.subr.mxu0 0.0
  %1139 = vmatpush1.msra.mxu0 0.0
  %1140 = vmatprep.subr.mxu0 0.0
  %1141 = vmatpush1.msra.mxu0 0.0
  %1142 = vmatprep.subr.mxu0 0.0
  %1143 = vmatpush1.msra.mxu0 0.0
  %1144 = vmatprep.subr.mxu0 0.0
  %1145 = vmatpush1.msra.mxu0 0.0
  %1146 = vmatprep.subr.mxu0 0.0
  %1147 = vmatpush1.msra.mxu0 0.0
  %1148 = vmatprep.subr.mxu0 0.0
  %1149 = vmatpush1.msra.mxu0 0.0
  %1150 = vmatprep.subr.mxu0 0.0
  %1151 = vmatpush1.msra.mxu0 0.0
  %1152 = vmatprep.subr.mxu0 0.0
  %1153 = vmatpush1.msra.mxu0 0.0
  %1154 = vmatprep.subr.mxu0 0.0
  %1155 = vmatpush1.msra.mxu0 0.0
  %1156 = vmatprep.subr.mxu0 0.0
  %1157 = vmatpush1.msra.mxu0 0.0
  %1158 = vmatprep.subr.mxu0 0.0
  %1159 = vmatpush1.msra.mxu0 0.0
  %1160 = vmatprep.subr.mxu0 0.0
  %1161 = vmatpush1.msra.mxu0 0.0
  %1162 = vmatprep.subr.mxu0 0.0
  %1163 = vmatpush1.msra.mxu0 0.0
  %1164 = vmatprep.subr.mxu0 0.0
  %1165 = vmatpush1.msra.mxu0 0.0
  %1166 = vmatprep.subr.mxu0 0.0
  %1167 = vmatpush1.msra.mxu0 0.0
  %1168 = vmatprep.subr.mxu0 0.0
  %1169 = vmatpush1.msra.mxu0 0.0
  %1170 = vmatprep.subr.mxu0 0.0
  %1171 = vmatpush1.msra.mxu0 0.0
  %1172 = vmatprep.subr.mxu0 0.0
  %1173 = vmatpush1.msra.mxu0 0.0
  %1174 = vmatprep.subr.mxu0 0.0
  %1175 = vmatpush1.msra.mxu0 0.0
  %1176 = vmatprep.subr.mxu0 0.0
  %1177 = vmatpush1.msra.mxu0 0.0
  %1178 = vmatprep.subr.mxu0 0.0
  %1179 = vmatpush1.msra.mxu0 0.0
  %1180 = vmatprep.subr.mxu0 0.0
  %1181 = vmatpush1.msra.mxu0 0.0
  %1182 = vmatprep.mubr.f32.mxu0 0.0
  %1183 = vmatmul.mubr.f32.gmra.mrb[0].mxu0 %v1104
  %v1184 = vpop.f32.mrb[0].mxu0
  %v1185 = vadd.f32 %v1101, %v1184
  %v1186 = vpop.f32.mrb[0].mxu0
  %1187 = vmatprep.mubr.f32.mxu0 0.0
  %1188 = vmatmul.mubr.f32.gmra.mrb[0].mxu0 %v1107
  %v1189 = vpop.f32.mrb[0].mxu0
  %v1190 = vadd.f32 %v1101, %v1189
  %v1191 = vpop.f32.mrb[0].mxu0
  %1192 = vmatprep.mubr.f32.mxu0 0.0
  %1193 = vmatmul.mubr.f32.gmra.mrb[0].mxu0 %v1110
  %v1194 = vpop.f32.mrb[0].mxu0
  %v1195 = vadd.f32 %v1101, %v1194
  %v1196 = vpop.f32.mrb[0].mxu0
  %1197 = vmatprep.mubr.f32.mxu0 0.0
  %1198 = vmatmul.mubr.f32.gmra.mrb[0].mxu0 %v1113
  %v1199 = vpop.f32.mrb[0].mxu0
  %v1200 = vadd.f32 %v1101, %v1199
  %v1201 = vpop.f32.mrb[0].mxu0
  %1202 = vmatprep.mubr.f32.mxu0 0.0
  %1203 = vmatmul.mubr.f32.gmra.mrb[0].mxu0 %v1116
  %v1204 = vpop.f32.mrb[0].mxu0
  %v1205 = vadd.f32 %v1101, %v1204
  %v1206 = vpop.f32.mrb[0].mxu0
  %1207 = vdwg.mxu0
  %v1208 = vmax.f32 %v1185, 0.0
  %v1209 = vmax.f32 %v1190, 0.0
  %v1210 = vmax.f32 %v1195, 0.0
  %v1211 = vmax.f32 %v1200, 0.0
  %v1212 = vmax.f32 %v1205, 0.0
  %v1213 = vld [vmem:[%s23] sm:$0xff]
  %v1214 = vld [vmem:[%s23 + $0x8] sm:$0xff]
  %v1215 = vld [vmem:[%s23 + $0x10] sm:$0xff]
  %v1216 = vld [vmem:[%s23 + $0x18] sm:$0xff]
  %v1217 = vld [vmem:[%s24] sm:$0x1]
  %v1219 = vlaneseq
  %v1220 = vshrl.u32 %v1219, 7
  %v1221 = vsub.s32 0, %v1220
  %v1222 = vrot.slane %v1217, %v1221
  %v1225 = vsel %vm94, %v1208, 0
  %v1228 = vsel %vm94, %v1209, 0
  %v1231 = vsel %vm94, %v1210, 0
  %v1234 = vsel %vm94, %v1211, 0
  %v1237 = vsel %vm94, %v1212, 0
  %1239 = vmatprep.subr.mxu0 0.0
  %1240 = vmatpush1.msra.mxu0 %v1213
  %1241 = vmatprep.subr.mxu0 0.0
  %1242 = vmatpush1.msra.mxu0 %v1214
  %1243 = vmatprep.subr.mxu0 0.0
  %1244 = vmatpush1.msra.mxu0 %v1215
  %1245 = vmatprep.subr.mxu0 0.0
  %1246 = vmatpush1.msra.mxu0 %v1216
  %1247 = vmatprep.subr.mxu0 0.0
  %1248 = vmatpush1.msra.mxu0 0.0
  %1249 = vmatprep.subr.mxu0 0.0
  %1250 = vmatpush1.msra.mxu0 0.0
  %1251 = vmatprep.subr.mxu0 0.0
  %1252 = vmatpush1.msra.mxu0 0.0
  %1253 = vmatprep.subr.mxu0 0.0
  %1254 = vmatpush1.msra.mxu0 0.0
  %1255 = vmatprep.subr.mxu0 0.0
  %1256 = vmatpush1.msra.mxu0 0.0
  %1257 = vmatprep.subr.mxu0 0.0
  %1258 = vmatpush1.msra.mxu0 0.0
  %1259 = vmatprep.subr.mxu0 0.0
  %1260 = vmatpush1.msra.mxu0 0.0
  %1261 = vmatprep.subr.mxu0 0.0
  %1262 = vmatpush1.msra.mxu0 0.0
  %1263 = vmatprep.subr.mxu0 0.0
  %1264 = vmatpush1.msra.mxu0 0.0
  %1265 = vmatprep.subr.mxu0 0.0
  %1266 = vmatpush1.msra.mxu0 0.0
  %1267 = vmatprep.subr.mxu0 0.0
  %1268 = vmatpush1.msra.mxu0 0.0
  %1269 = vmatprep.subr.mxu0 0.0
  %1270 = vmatpush1.msra.mxu0 0.0
  %1271 = vmatprep.subr.mxu0 0.0
  %1272 = vmatpush1.msra.mxu0 0.0
  %1273 = vmatprep.subr.mxu0 0.0
  %1274 = vmatpush1.msra.mxu0 0.0
  %1275 = vmatprep.subr.mxu0 0.0
  %1276 = vmatpush1.msra.mxu0 0.0
  %1277 = vmatprep.subr.mxu0 0.0
  %1278 = vmatpush1.msra.mxu0 0.0
  %1279 = vmatprep.subr.mxu0 0.0
  %1280 = vmatpush1.msra.mxu0 0.0
  %1281 = vmatprep.subr.mxu0 0.0
  %1282 = vmatpush1.msra.mxu0 0.0
  %1283 = vmatprep.subr.mxu0 0.0
  %1284 = vmatpush1.msra.mxu0 0.0
  %1285 = vmatprep.subr.mxu0 0.0
  %1286 = vmatpush1.msra.mxu0 0.0
  %1287 = vmatprep.subr.mxu0 0.0
  %1288 = vmatpush1.msra.mxu0 0.0
  %1289 = vmatprep.subr.mxu0 0.0
  %1290 = vmatpush1.msra.mxu0 0.0
  %1291 = vmatprep.subr.mxu0 0.0
  %1292 = vmatpush1.msra.mxu0 0.0
  %1293 = vmatprep.subr.mxu0 0.0
  %1294 = vmatpush1.msra.mxu0 0.0
  %1295 = vmatprep.subr.mxu0 0.0
  %1296 = vmatpush1.msra.mxu0 0.0
  %1297 = vmatprep.subr.mxu0 0.0
  %1298 = vmatpush1.msra.mxu0 0.0
  %1299 = vmatprep.subr.mxu0 0.0
  %1300 = vmatpush1.msra.mxu0 0.0
  %1301 = vmatprep.subr.mxu0 0.0
  %1302 = vmatpush1.msra.mxu0 0.0
  %1303 = vmatprep.mubr.f32.mxu0 0.0
  %1304 = vmatmul.mubr.f32.gmra.mrb[0].mxu0 %v1225
  %v1305 = vpop.f32.mrb[0].mxu0
  %v1306 = vadd.f32 %v1222, %v1305
  %v1307 = vpop.f32.mrb[0].mxu0
  %1308 = vmatprep.mubr.f32.mxu0 0.0
  %1309 = vmatmul.mubr.f32.gmra.mrb[0].mxu0 %v1228
  %v1310 = vpop.f32.mrb[0].mxu0
  %v1311 = vadd.f32 %v1222, %v1310
  %v1312 = vpop.f32.mrb[0].mxu0
  %1313 = vmatprep.mubr.f32.mxu0 0.0
  %1314 = vmatmul.mubr.f32.gmra.mrb[0].mxu0 %v1231
  %v1315 = vpop.f32.mrb[0].mxu0
  %v1316 = vadd.f32 %v1222, %v1315
  %v1317 = vpop.f32.mrb[0].mxu0
  %1318 = vmatprep.mubr.f32.mxu0 0.0
  %1319 = vmatmul.mubr.f32.gmra.mrb[0].mxu0 %v1234
  %v1320 = vpop.f32.mrb[0].mxu0
  %v1321 = vadd.f32 %v1222, %v1320
  %v1322 = vpop.f32.mrb[0].mxu0
  %1323 = vmatprep.mubr.f32.mxu0 0.0
  %1324 = vmatmul.mubr.f32.gmra.mrb[0].mxu0 %v1237
  %v1325 = vpop.f32.mrb[0].mxu0
  %v1326 = vadd.f32 %v1222, %v1325
  %v1327 = vpop.f32.mrb[0].mxu0
  %1328 = vdwg.mxu0
  %v1329 = vadd.f32 %v860, %v1306
  %v1330 = vadd.f32 %v865, %v1311
  %v1331 = vadd.f32 %v870, %v1316
  %v1332 = vadd.f32 %v875, %v1321
  %v1333 = vadd.f32 %v880, %v1326
  %1334 = vst [vmem:[%s25] sm:$0xff] %v1329
  %1335 = vst [vmem:[%s25 + $0x8] sm:$0xff] %v1330
  %1336 = vst [vmem:[%s25 + $0x10] sm:$0xff] %v1331
  %1337 = vst [vmem:[%s25 + $0x18] sm:$0xff] %v1332
  %1338 = vst [vmem:[%s25 + $0x20] sm:$0xff] %v1333
  %1339 = vst [vmem:[%s26] sm:$0xff] 0.0
  %1340 = vst.msk [vmem:[%s26] sm:$0xff] %vm521, %v535
  %1342 = vrot.lane.b32.xlu0 %v533, 5
  %v1343 = vpop.permute.xlu0 %1342
  %vm1345 = vcmask 80936
  %1346 = vst.msk [vmem:[%s26] sm:$0xff] %vm1345, %v1343
  %1347 = vrot.lane.b32.xlu0 %v265, 10
  %v1348 = vpop.permute.xlu0 %1347
  %vm1350 = vcmask 212048
  %1351 = vst.msk [vmem:[%s26] sm:$0xff] %vm1350, %v1348
  // Predicated region
  $region102: #{m1_m2_vae_forward.1} parent=0 // pred_check
    _
  $region103: #{m1_m2_vae_forward.1} parent=0 // pred_check_branch
    %1353 = sbr.rel (0) target = $region105
  $region104: #{m1_m2_vae_forward.1} parent=0 // pred_region
    _
  $region105: #{m1_m2_vae_forward.1} parent=0 // pred_fallthru
    _
  // Predicated region
  $region106: #{m1_m2_vae_forward.1} parent=0 // pred_check
    _
  $region107: #{m1_m2_vae_forward.1} parent=0 // pred_check_branch
    %1355 = sbr.rel (0) target = $region109
  $region108: #{m1_m2_vae_forward.1} parent=0 // pred_region
    _
  $region109: #{m1_m2_vae_forward.1} parent=0 // pred_fallthru
    _
  // Predicated region
  $region110: #{m1_m2_vae_forward.1} parent=0 // pred_check
    _
  $region111: #{m1_m2_vae_forward.1} parent=0 // pred_check_branch
    %1357 = sbr.rel (0) target = $region113
  $region112: #{m1_m2_vae_forward.1} parent=0 // pred_region
    _
  $region113: #{m1_m2_vae_forward.1} parent=0 // pred_fallthru
    _
  // Predicated region
  $region114: #{m1_m2_vae_forward.1} parent=0 // pred_check
    _
  $region115: #{m1_m2_vae_forward.1} parent=0 // pred_check_branch
    %1359 = sbr.rel (0) target = $region117
  $region116: #{m1_m2_vae_forward.1} parent=0 // pred_region
    _
  $region117: #{m1_m2_vae_forward.1} parent=0 // pred_fallthru
    _

</llo_original>
